<compile_context>
chip_gen: v7x
topology: tpu7x:2x2x1
jax: 0.10.0
libtpu: 0.0.40
codegen_flags: <defaults>
</compile_context>

<pallas_src>
import jax
import jax.numpy as jnp
from jax.experimental import pallas as pl
from jax.experimental.pallas import tpu as pltpu


def vae_fwd_kernel(x_ref, eps_ref,
                   w1_ref, b1_ref, whead_ref, bhead_ref,
                   w3_ref, b3_ref, w4_ref, b4_ref,
                   out_ref):
    """Fused VAE forward for one batch tile.

    Output slab layout (lane-dense, width padded to a multiple of 128):
      [0 : L2)              recon
      [L2 : L2+K0)          mu
      [L2+K0 : L2+2K0)      logvar
      [L2+2K0 : L2+3K0)     h
      [L2+3K0 : out_w)      zero pad
    """
    k0 = eps_ref.shape[1]
    l2 = w4_ref.shape[1]

    x = x_ref[...]                                     # bf16 (bn, L1)

    # ---- encode: h1 = tanh(fc1(x)); [mu | logvar] = fused fc21/fc22 ----
    h1 = jnp.tanh(
        jnp.dot(x, w1_ref[...], preferred_element_type=jnp.float32)
        + b1_ref[...])                                 # f32 (bn, K1)
    mu_logvar = (jnp.dot(h1.astype(jnp.bfloat16), whead_ref[...],
                         preferred_element_type=jnp.float32)
                 + bhead_ref[...])                     # f32 (bn, 2*K0)
    mu = mu_logvar[:, :k0]
    logvar = mu_logvar[:, k0:]

    # ---- reparameterize (training mode): h = eps * exp(0.5*logvar) + mu ----
    std = jnp.exp(0.5 * logvar)
    h = eps_ref[...] * std + mu                        # f32 (bn, K0)

    # ---- decode: z1 = tanh(fc3(h)); recon = sigmoid(fc4(z1)) ----
    z1 = jnp.tanh(
        jnp.dot(h.astype(jnp.bfloat16), w3_ref[...],
                preferred_element_type=jnp.float32)
        + b3_ref[...])
    logits = (jnp.dot(z1.astype(jnp.bfloat16), w4_ref[...],
                      preferred_element_type=jnp.float32)
              + b4_ref[...])
    recon = jax.nn.sigmoid(logits)

    # ---- lane-dense packed writeback ----
    out_ref[:, 0:l2] = recon
    out_ref[:, l2:l2 + 2 * k0] = mu_logvar
    out_ref[:, l2 + 2 * k0:l2 + 3 * k0] = h
    pad = out_ref.shape[1] - (l2 + 3 * k0)
    if pad > 0:
        out_ref[:, l2 + 3 * k0:] = jnp.zeros((out_ref.shape[0], pad),
                                             jnp.float32)


def vae_forward(x, eps, params, *, block_n=128):
    """Full VAE forward: batch-tiled pallas_call, packed-slab output split here."""
    N, L1 = x.shape
    K1 = params["w1"].shape[1]
    K0 = params["w21"].shape[1]
    L2 = params["w4"].shape[1]

    out_w = ((L2 + 3 * K0 + 127) // 128) * 128         # lane-dense slab width

    # Pad the batch to a multiple of the tile size.
    n_blocks = pl.cdiv(N, block_n)
    Np = n_blocks * block_n
    if Np != N:
        x = jnp.pad(x, ((0, Np - N), (0, 0)))
        eps = jnp.pad(eps, ((0, Np - N), (0, 0)))

    # bf16 MXU operands; biases stay f32 (added after f32 accumulation).
    xb = x.astype(jnp.bfloat16)
    eps_f = eps.astype(jnp.float32)
    w1 = params["w1"].astype(jnp.bfloat16)
    whead = jnp.concatenate([params["w21"], params["w22"]],
                            axis=1).astype(jnp.bfloat16)
    bhead = jnp.concatenate([params["b21"], params["b22"]],
                            axis=1).astype(jnp.float32)
    w3 = params["w3"].astype(jnp.bfloat16)
    w4 = params["w4"].astype(jnp.bfloat16)
    b1 = params["b1"].astype(jnp.float32)
    b3 = params["b3"].astype(jnp.float32)
    b4 = params["b4"].astype(jnp.float32)

    def resident(arr):
        # Same block every grid step -> stays resident in VMEM (no re-DMA).
        return pl.BlockSpec(arr.shape, lambda i: (0, 0))

    flops = 2 * Np * (L1 * K1 + K1 * 2 * K0 + K0 * K1 + K1 * L2)
    transcendentals = Np * (2 * K1 + K0 + L2)          # tanh, exp, tanh, sigmoid
    weight_bytes = sum(int(a.size) * a.dtype.itemsize
                       for a in (w1, b1, whead, bhead, w3, b3, w4, b4))
    bytes_accessed = (int(xb.size) * 2 + int(eps_f.size) * 4
                      + Np * out_w * 4 + weight_bytes)

    slab = pl.pallas_call(
        vae_fwd_kernel,
        out_shape=jax.ShapeDtypeStruct((Np, out_w), jnp.float32),
        grid=(n_blocks,),
        in_specs=[
            pl.BlockSpec((block_n, L1), lambda i: (i, 0)),   # x batch tile
            pl.BlockSpec((block_n, K0), lambda i: (i, 0)),   # eps batch tile
            resident(w1), resident(b1),
            resident(whead), resident(bhead),
            resident(w3), resident(b3),
            resident(w4), resident(b4),
        ],
        out_specs=pl.BlockSpec((block_n, out_w), lambda i: (i, 0)),
        compiler_params=pltpu.CompilerParams(
            dimension_semantics=("parallel",),
            vmem_limit_bytes=32 * 1024 * 1024,
        ),
        cost_estimate=pl.CostEstimate(
            flops=flops,
            transcendentals=transcendentals,
            bytes_accessed=bytes_accessed),
    )(xb, eps_f, w1, b1, whead, bhead, w3, b3, w4, b4)

    recon = slab[:N, :L2]
    mu = slab[:N, L2:L2 + K0]
    logvar = slab[:N, L2 + K0:L2 + 2 * K0]
    h = slab[:N, L2 + 2 * K0:L2 + 3 * K0]
    return recon, mu, logvar, h


def init_linear(key, fan_in, fan_out):
    """PyTorch nn.Linear default init: U(-1/sqrt(fan_in), 1/sqrt(fan_in))."""
    kw, kb = jax.random.split(key)
    bound = 1.0 / jnp.sqrt(jnp.float32(fan_in))
    w = jax.random.uniform(kw, (fan_in, fan_out), jnp.float32, -bound, bound)
    b = jax.random.uniform(kb, (1, fan_out), jnp.float32, -bound, bound)
    return w, b


if __name__ == "__main__":
    # Shapes consistent with the module: M=8 -> L1 = L2 = M*M = 64,
    # Ks = [K0, K1] = [16, 32]. Batch N=256 -> two 128-row batch tiles.
    M = 8
    L1 = L2 = M * M
    K0, K1 = 16, 32
    N = 256

    key = jax.random.PRNGKey(0)
    kx, keps, k1, k21, k22, k3, k4 = jax.random.split(key, 7)

    params = {}
    params["w1"], params["b1"] = init_linear(k1, L1, K1)
    params["w21"], params["b21"] = init_linear(k21, K1, K0)
    params["w22"], params["b22"] = init_linear(k22, K1, K0)
    params["w3"], params["b3"] = init_linear(k3, K0, K1)
    params["w4"], params["b4"] = init_linear(k4, K1, L2)

    # Image-like input in [0,1], flattened to (N, L1) like `tar.view(-1, L2)`.
    x = jax.random.uniform(kx, (N, L1), jnp.float32)
    # Reparameterization noise eps ~ N(0,1), drawn host-side (matches
    # std.data.new(...).normal_() in training mode).
    eps = jax.random.normal(keps, (N, K0), jnp.float32)

    recon, mu, logvar, h = vae_forward(x, eps, params, block_n=128)
    jax.block_until_ready((recon, mu, logvar, h))

    # Pure-JAX reference with the SAME bf16 matmul operands / f32 accumulation
    # and f32 elementwise math as the kernel.
    bf = lambda a: a.astype(jnp.bfloat16)
    h1_ref = jnp.tanh(jnp.dot(bf(x), bf(params["w1"]),
                              preferred_element_type=jnp.float32)
                      + params["b1"])
    mu_ref = jnp.dot(bf(h1_ref), bf(params["w21"]),
                     preferred_element_type=jnp.float32) + params["b21"]
    lv_ref = jnp.dot(bf(h1_ref), bf(params["w22"]),
                     preferred_element_type=jnp.float32) + params["b22"]
    h_ref = eps * jnp.exp(0.5 * lv_ref) + mu_ref
    z1_ref = jnp.tanh(jnp.dot(bf(h_ref), bf(params["w3"]),
                              preferred_element_type=jnp.float32)
                      + params["b3"])
    rec_ref = jax.nn.sigmoid(jnp.dot(bf(z1_ref), bf(params["w4"]),
                                     preferred_element_type=jnp.float32)
                             + params["b4"])

    assert jnp.allclose(recon, rec_ref, atol=2e-3, rtol=2e-3)
    assert jnp.allclose(mu, mu_ref, atol=2e-3, rtol=2e-3)
    assert jnp.allclose(logvar, lv_ref, atol=2e-3, rtol=2e-3)
    assert jnp.allclose(h, h_ref, atol=2e-3, rtol=2e-3)

    print("KERNEL_OK")
</pallas_src>

<mosaic_0001>
module attributes {stable_mosaic.version = 11 : i64} {
  func.func @vae_fwd_kernel(%arg0: i32, %arg1: memref<128x64xbf16, #tpu.memory_space<vmem>>, %arg2: memref<128x16xf32, #tpu.memory_space<vmem>>, %arg3: memref<64x32xbf16, #tpu.memory_space<vmem>>, %arg4: memref<1x32xf32, #tpu.memory_space<vmem>>, %arg5: memref<32x32xbf16, #tpu.memory_space<vmem>>, %arg6: memref<1x32xf32, #tpu.memory_space<vmem>>, %arg7: memref<16x32xbf16, #tpu.memory_space<vmem>>, %arg8: memref<1x32xf32, #tpu.memory_space<vmem>>, %arg9: memref<32x64xbf16, #tpu.memory_space<vmem>>, %arg10: memref<1x64xf32, #tpu.memory_space<vmem>>, %arg11: memref<128x128xf32, #tpu.memory_space<vmem>>) attributes {dimension_semantics = [#tpu.dimension_semantics<parallel>], iteration_bounds = array<i64: 2>, scalar_prefetch = 0 : i64, scratch_operands = 0 : i64, tpu.core_type = #tpu.core_type<tc>, window_params = [{transform_indices = @transform_0, window_bounds = array<i64: 128, 64>}, {transform_indices = @transform_1, window_bounds = array<i64: 128, 16>}, {pipeline_mode = #tpu.pipeline_mode<synchronous>, transform_indices = @transform_2, window_bounds = array<i64: 64, 32>}, {pipeline_mode = #tpu.pipeline_mode<synchronous>, transform_indices = @transform_3, window_bounds = array<i64: 1, 32>}, {pipeline_mode = #tpu.pipeline_mode<synchronous>, transform_indices = @transform_4, window_bounds = array<i64: 32, 32>}, {pipeline_mode = #tpu.pipeline_mode<synchronous>, transform_indices = @transform_5, window_bounds = array<i64: 1, 32>}, {pipeline_mode = #tpu.pipeline_mode<synchronous>, transform_indices = @transform_6, window_bounds = array<i64: 16, 32>}, {pipeline_mode = #tpu.pipeline_mode<synchronous>, transform_indices = @transform_7, window_bounds = array<i64: 1, 32>}, {pipeline_mode = #tpu.pipeline_mode<synchronous>, transform_indices = @transform_8, window_bounds = array<i64: 32, 64>}, {pipeline_mode = #tpu.pipeline_mode<synchronous>, transform_indices = @transform_9, window_bounds = array<i64: 1, 64>}, {transform_indices = @transform_10, window_bounds = array<i64: 128, 128>}]} {
    %c0 = arith.constant 0 : index
    %c0_0 = arith.constant 0 : index
    %0 = vector.load %arg1[%c0, %c0_0] : memref<128x64xbf16, #tpu.memory_space<vmem>>, vector<128x64xbf16>
    %c0_1 = arith.constant 0 : index
    %c0_2 = arith.constant 0 : index
    %1 = vector.load %arg3[%c0_1, %c0_2] : memref<64x32xbf16, #tpu.memory_space<vmem>>, vector<64x32xbf16>
    %cst = arith.constant dense<0.000000e+00> : vector<128x32xf32>
    %2 = tpu.matmul %0, %1, %cst {dimension_numbers = #tpu.dot_dimension_numbers<[1], [0], [0], [1], [0, 0, 1, 1], [], []>} : vector<128x64xbf16>, vector<64x32xbf16>, vector<128x32xf32> -> vector<128x32xf32>
    %c0_3 = arith.constant 0 : index
    %c0_4 = arith.constant 0 : index
    %3 = vector.load %arg4[%c0_3, %c0_4] : memref<1x32xf32, #tpu.memory_space<vmem>>, vector<1x32xf32>
    %4 = vector.broadcast %3 : vector<1x32xf32> to vector<128x32xf32>
    %5 = arith.addf %2, %4 : vector<128x32xf32>
    %6 = math.tanh %5 : vector<128x32xf32>
    %7 = arith.truncf %6 : vector<128x32xf32> to vector<128x32xbf16>
    %c0_5 = arith.constant 0 : index
    %c0_6 = arith.constant 0 : index
    %8 = vector.load %arg5[%c0_5, %c0_6] : memref<32x32xbf16, #tpu.memory_space<vmem>>, vector<32x32xbf16>
    %cst_7 = arith.constant dense<0.000000e+00> : vector<128x32xf32>
    %9 = tpu.matmul %7, %8, %cst_7 {dimension_numbers = #tpu.dot_dimension_numbers<[1], [0], [0], [1], [0, 0, 1, 1], [], []>} : vector<128x32xbf16>, vector<32x32xbf16>, vector<128x32xf32> -> vector<128x32xf32>
    %c0_8 = arith.constant 0 : index
    %c0_9 = arith.constant 0 : index
    %10 = vector.load %arg6[%c0_8, %c0_9] : memref<1x32xf32, #tpu.memory_space<vmem>>, vector<1x32xf32>
    %11 = vector.broadcast %10 : vector<1x32xf32> to vector<128x32xf32>
    %12 = arith.addf %9, %11 : vector<128x32xf32>
    %13 = vector.extract_strided_slice %12 {offsets = [0, 0], sizes = [128, 16], strides = [1, 1]} : vector<128x32xf32> to vector<128x16xf32>
    %14 = vector.extract_strided_slice %12 {offsets = [0, 16], sizes = [128, 16], strides = [1, 1]} : vector<128x32xf32> to vector<128x16xf32>
    %cst_10 = arith.constant 5.000000e-01 : f32
    %15 = vector.broadcast %cst_10 : f32 to vector<128x16xf32>
    %16 = arith.mulf %15, %14 : vector<128x16xf32>
    %17 = math.exp %16 : vector<128x16xf32>
    %c0_11 = arith.constant 0 : index
    %c0_12 = arith.constant 0 : index
    %18 = vector.load %arg2[%c0_11, %c0_12] : memref<128x16xf32, #tpu.memory_space<vmem>>, vector<128x16xf32>
    %19 = arith.mulf %18, %17 : vector<128x16xf32>
    %20 = arith.addf %19, %13 : vector<128x16xf32>
    %21 = arith.truncf %20 : vector<128x16xf32> to vector<128x16xbf16>
    %c0_13 = arith.constant 0 : index
    %c0_14 = arith.constant 0 : index
    %22 = vector.load %arg7[%c0_13, %c0_14] : memref<16x32xbf16, #tpu.memory_space<vmem>>, vector<16x32xbf16>
    %cst_15 = arith.constant dense<0.000000e+00> : vector<128x32xf32>
    %23 = tpu.matmul %21, %22, %cst_15 {dimension_numbers = #tpu.dot_dimension_numbers<[1], [0], [0], [1], [0, 0, 1, 1], [], []>} : vector<128x16xbf16>, vector<16x32xbf16>, vector<128x32xf32> -> vector<128x32xf32>
    %c0_16 = arith.constant 0 : index
    %c0_17 = arith.constant 0 : index
    %24 = vector.load %arg8[%c0_16, %c0_17] : memref<1x32xf32, #tpu.memory_space<vmem>>, vector<1x32xf32>
    %25 = vector.broadcast %24 : vector<1x32xf32> to vector<128x32xf32>
    %26 = arith.addf %23, %25 : vector<128x32xf32>
    %27 = math.tanh %26 : vector<128x32xf32>
    %28 = arith.truncf %27 : vector<128x32xf32> to vector<128x32xbf16>
    %c0_18 = arith.constant 0 : index
    %c0_19 = arith.constant 0 : index
    %29 = vector.load %arg9[%c0_18, %c0_19] : memref<32x64xbf16, #tpu.memory_space<vmem>>, vector<32x64xbf16>
    %cst_20 = arith.constant dense<0.000000e+00> : vector<128x64xf32>
    %30 = tpu.matmul %28, %29, %cst_20 {dimension_numbers = #tpu.dot_dimension_numbers<[1], [0], [0], [1], [0, 0, 1, 1], [], []>} : vector<128x32xbf16>, vector<32x64xbf16>, vector<128x64xf32> -> vector<128x64xf32>
    %c0_21 = arith.constant 0 : index
    %c0_22 = arith.constant 0 : index
    %31 = vector.load %arg10[%c0_21, %c0_22] : memref<1x64xf32, #tpu.memory_space<vmem>>, vector<1x64xf32>
    %32 = vector.broadcast %31 : vector<1x64xf32> to vector<128x64xf32>
    %33 = arith.addf %30, %32 : vector<128x64xf32>
    %34 = arith.negf %33 : vector<128x64xf32>
    %35 = math.exp %34 : vector<128x64xf32>
    %cst_23 = arith.constant 1.000000e+00 : f32
    %36 = vector.broadcast %cst_23 : f32 to vector<128x64xf32>
    %37 = arith.addf %36, %35 : vector<128x64xf32>
    %38 = arith.divf %36, %37 : vector<128x64xf32>
    %c0_24 = arith.constant 0 : index
    %c0_25 = arith.constant 0 : index
    %39 = vector.load %arg11[%c0_24, %c0_25] : memref<128x128xf32, #tpu.memory_space<vmem>>, vector<128x64xf32>
    tpu.vector_store %arg11[%c0_24, %c0_25], %38 {strides = array<i32>} : memref<128x128xf32, #tpu.memory_space<vmem>>, vector<128x64xf32>,
    %c0_26 = arith.constant 0 : index
    %c64 = arith.constant 64 : index
    %40 = vector.load %arg11[%c0_26, %c64] : memref<128x128xf32, #tpu.memory_space<vmem>>, vector<128x32xf32>
    tpu.vector_store %arg11[%c0_26, %c64], %12 {strides = array<i32>} : memref<128x128xf32, #tpu.memory_space<vmem>>, vector<128x32xf32>,
    %c0_27 = arith.constant 0 : index
    %c96 = arith.constant 96 : index
    %41 = vector.load %arg11[%c0_27, %c96] : memref<128x128xf32, #tpu.memory_space<vmem>>, vector<128x16xf32>
    tpu.vector_store %arg11[%c0_27, %c96], %20 {strides = array<i32>} : memref<128x128xf32, #tpu.memory_space<vmem>>, vector<128x16xf32>,
    %cst_28 = arith.constant 0.000000e+00 : f32
    %42 = vector.broadcast %cst_28 : f32 to vector<128x16xf32>
    %c0_29 = arith.constant 0 : index
    %c112 = arith.constant 112 : index
    %43 = vector.load %arg11[%c0_29, %c112] : memref<128x128xf32, #tpu.memory_space<vmem>>, vector<128x16xf32>
    tpu.vector_store %arg11[%c0_29, %c112], %42 {strides = array<i32>} : memref<128x128xf32, #tpu.memory_space<vmem>>, vector<128x16xf32>,
    return
  }
  func.func @transform_0(%arg0: i32) -> (i32, i32) {
    %c0_i32 = arith.constant 0 : i32
    %c0_i32_0 = arith.constant 0 : i32
    return %arg0, %c0_i32 : i32, i32
  }
  func.func @transform_1(%arg0: i32) -> (i32, i32) {
    %c0_i32 = arith.constant 0 : i32
    %c0_i32_0 = arith.constant 0 : i32
    return %arg0, %c0_i32 : i32, i32
  }
  func.func @transform_2(%arg0: i32) -> (i32, i32) {
    %c0_i32 = arith.constant 0 : i32
    %c0_i32_0 = arith.constant 0 : i32
    %c0_i32_1 = arith.constant 0 : i32
    return %c0_i32, %c0_i32_0 : i32, i32
  }
  func.func @transform_3(%arg0: i32) -> (i32, i32) {
    %c0_i32 = arith.constant 0 : i32
    %c0_i32_0 = arith.constant 0 : i32
    %c0_i32_1 = arith.constant 0 : i32
    return %c0_i32, %c0_i32_0 : i32, i32
  }
  func.func @transform_4(%arg0: i32) -> (i32, i32) {
    %c0_i32 = arith.constant 0 : i32
    %c0_i32_0 = arith.constant 0 : i32
    %c0_i32_1 = arith.constant 0 : i32
    return %c0_i32, %c0_i32_0 : i32, i32
  }
  func.func @transform_5(%arg0: i32) -> (i32, i32) {
    %c0_i32 = arith.constant 0 : i32
    %c0_i32_0 = arith.constant 0 : i32
    %c0_i32_1 = arith.constant 0 : i32
    return %c0_i32, %c0_i32_0 : i32, i32
  }
  func.func @transform_6(%arg0: i32) -> (i32, i32) {
    %c0_i32 = arith.constant 0 : i32
    %c0_i32_0 = arith.constant 0 : i32
    %c0_i32_1 = arith.constant 0 : i32
    return %c0_i32, %c0_i32_0 : i32, i32
  }
  func.func @transform_7(%arg0: i32) -> (i32, i32) {
    %c0_i32 = arith.constant 0 : i32
    %c0_i32_0 = arith.constant 0 : i32
    %c0_i32_1 = arith.constant 0 : i32
    return %c0_i32, %c0_i32_0 : i32, i32
  }
  func.func @transform_8(%arg0: i32) -> (i32, i32) {
    %c0_i32 = arith.constant 0 : i32
    %c0_i32_0 = arith.constant 0 : i32
    %c0_i32_1 = arith.constant 0 : i32
    return %c0_i32, %c0_i32_0 : i32, i32
  }
  func.func @transform_9(%arg0: i32) -> (i32, i32) {
    %c0_i32 = arith.constant 0 : i32
    %c0_i32_0 = arith.constant 0 : i32
    %c0_i32_1 = arith.constant 0 : i32
    return %c0_i32, %c0_i32_0 : i32, i32
  }
  func.func @transform_10(%arg0: i32) -> (i32, i32) {
    %c0_i32 = arith.constant 0 : i32
    %c0_i32_0 = arith.constant 0 : i32
    return %arg0, %c0_i32 : i32, i32
  }
}

</mosaic_0001>

<llo_original>
// kernel: tpu_custom_call.1
$region0: #{tpu_custom_call.1}
  #allocation0 [shape = 'u32[]', space=smem, size = 0x4, offset = 0x4, fixed_abs, tag = 'smem constant byte address 0x4 - core index']
  #allocation1 [shape = 'u32[144,128]{1,0:T(1,128)}', space=vmem, size = 0x12000, scoped, tag = 'internal scratch']
  %s0 = inlined_call_operand.vmem [shape: bf16[256,64], index: 0, kind: input, shape index: {}]
  %s1 = inlined_call_operand.vmem [shape: f32[256,16], index: 1, kind: input, shape index: {}]
  %s2 = inlined_call_operand.vmem [shape: bf16[64,32], index: 2, kind: input, shape index: {}]
  %s3 = inlined_call_operand.vmem [shape: f32[1,32], index: 3, kind: input, shape index: {}]
  %s4 = inlined_call_operand.vmem [shape: bf16[32,32], index: 4, kind: input, shape index: {}]
  %s5 = inlined_call_operand.vmem [shape: f32[1,32], index: 5, kind: input, shape index: {}]
  %s6 = inlined_call_operand.vmem [shape: bf16[16,32], index: 6, kind: input, shape index: {}]
  %s7 = inlined_call_operand.vmem [shape: f32[1,32], index: 7, kind: input, shape index: {}]
  %s8 = inlined_call_operand.vmem [shape: bf16[32,64], index: 8, kind: input, shape index: {}]
  %s9 = inlined_call_operand.vmem [shape: f32[1,64], index: 9, kind: input, shape index: {}]
  %s10 = inlined_call_operand.hbm [shape: f32[256,128], index: 10, kind: output, shape index: {}]
  %s11 = sld [smem:[#allocation0]]
  $region73: #{tpu_custom_call.1} parent=0
    _
  %s13 = ssub.s32 1, %s11
  %s14 = scalar_select 0, %s13, %s11
  $region1: #{tpu_custom_call.1} parent=0
    #allocation2 [shape = 'u8[131072]{0}', space=vmem, size = 0x20000, scoped, tag = 'output window, operand 0']
    #allocation3 [shape = 's32[2]{0}', space=sflag, size = 0x8, scoped, tag = 'scoped memory for tpu_custom_call.1']
    %15 = vsyncpa [#allocation3], 0
    %s16 = scalar_lea.sflag [#allocation3], 1
    %17 = vsyncpa %s16, 0
    loop: start=0, step=1, limit=4
    $region2: #{tpu_custom_call.1} parent=1 // loop_pre_header
      _
    $region3: #{tpu_custom_call.1} parent=1 // loop_header
      %s19 = sphi 0, %s23
      %p20 = scmp.ge.s32.totalorder %s19, 4
      %s29 = sphi 0, %s31
      %s32 = sphi 0, %s29
      %s33 = sphi 0, %s32
      %s49 = sphi 0, %s33
      %s55 = sphi 0, %s57
      %s58 = sphi 0, %s55
      %s59 = sphi 0, %s58
      %s75 = sphi 0, %s59
      %s79 = sphi 0, %s79
      %s81 = sphi 0, %s79
      %s82 = sphi 0, %s81
      %s96 = sphi 0, %s82
      %s100 = sphi 0, %s100
      %s102 = sphi 0, %s100
      %s103 = sphi 0, %s102
      %s117 = sphi 0, %s103
      %s121 = sphi 0, %s121
      %s123 = sphi 0, %s121
      %s124 = sphi 0, %s123
      %s138 = sphi 0, %s124
      %s142 = sphi 0, %s142
      %s144 = sphi 0, %s142
      %s145 = sphi 0, %s144
      %s159 = sphi 0, %s145
      %s163 = sphi 0, %s163
      %s165 = sphi 0, %s163
      %s166 = sphi 0, %s165
      %s180 = sphi 0, %s166
      %s184 = sphi 0, %s184
      %s186 = sphi 0, %s184
      %s187 = sphi 0, %s186
      %s201 = sphi 0, %s187
      %s205 = sphi 0, %s205
      %s207 = sphi 0, %s205
      %s208 = sphi 0, %s207
      %s222 = sphi 0, %s208
      %s226 = sphi 0, %s226
      %s228 = sphi 0, %s226
      %s229 = sphi 0, %s228
      %s243 = sphi 0, %s229
      %s249 = sphi 0, %s251
      %s252 = sphi 0, %s249
      %s253 = sphi 0, %s252
      %s269 = sphi 0, %s253
    $region4: #{tpu_custom_call.1} parent=1 // loop_header_branch
      %22 = sbr.rel (%p20) target = $region8
    $region5: #{tpu_custom_call.1} parent=1 // loop_body
      %s24 = ssub.s32 %s19, 1
      %s25 = ssub.s32 %s19, 2
      %s26 = sadd.s32 %s19, 1
      %s27 = ssub.s32 %s19, %s26
      %p28 = scmp.eq.s32.totalorder %s27, 0
      %s30 = sadd.s32 %s29, 1
      %s31 = scalar_select %p28, %s29, %s30
      %p34 = pneg %p28
      %p35 = scmp.eq.s32.totalorder %s19, 1
      %p36 = por %p34, %p35
      %p37 = scmp.ne.s32.totalorder %s29, %s32
      %p38 = scmp.eq.s32.totalorder %s19, 0
      %p39 = por %p37, %p38
      %p40 = scmp.ne.s32.totalorder %s29, %s32
      %p41 = scmp.eq.s32.totalorder %s24, 1
      %p42 = por %p40, %p41
      %p43 = scmp.ne.s32.totalorder %s32, %s33
      %p44 = scmp.eq.s32.totalorder %s24, 0
      %p45 = por %p43, %p44
      %p46 = scmp.ne.s32.totalorder %s32, %s33
      %p47 = scmp.eq.s32.totalorder %s25, 1
      %p48 = por %p46, %p47
      %p50 = scmp.ne.s32.totalorder %s33, %s49
      %p51 = scmp.eq.s32.totalorder %s25, 0
      %p52 = por %p50, %p51
      %s53 = ssub.s32 %s19, %s26
      %p54 = scmp.eq.s32.totalorder %s53, 0
      %s56 = sadd.s32 %s55, 1
      %s57 = scalar_select %p54, %s55, %s56
      %p60 = pneg %p54
      %p61 = scmp.eq.s32.totalorder %s19, 1
      %p62 = por %p60, %p61
      %p63 = scmp.ne.s32.totalorder %s55, %s58
      %p64 = scmp.eq.s32.totalorder %s19, 0
      %p65 = por %p63, %p64
      %p66 = scmp.ne.s32.totalorder %s55, %s58
      %p67 = scmp.eq.s32.totalorder %s24, 1
      %p68 = por %p66, %p67
      %p69 = scmp.ne.s32.totalorder %s58, %s59
      %p70 = scmp.eq.s32.totalorder %s24, 0
      %p71 = por %p69, %p70
      %p72 = scmp.ne.s32.totalorder %s58, %s59
      %p73 = scmp.eq.s32.totalorder %s25, 1
      %p74 = por %p72, %p73
      %p76 = scmp.ne.s32.totalorder %s59, %s75
      %p77 = scmp.eq.s32.totalorder %s25, 0
      %p78 = por %p76, %p77
      %s80 = sadd.s32 %s79, 1
      %p83 = scmp.eq.s32.totalorder %s19, 1
      %p84 = scmp.ne.s32.totalorder %s79, %s81
      %p85 = scmp.eq.s32.totalorder %s19, 0
      %p86 = por %p84, %p85
      %p87 = scmp.ne.s32.totalorder %s79, %s81
      %p88 = scmp.eq.s32.totalorder %s24, 1
      %p89 = por %p87, %p88
      %p90 = scmp.ne.s32.totalorder %s81, %s82
      %p91 = scmp.eq.s32.totalorder %s24, 0
      %p92 = por %p90, %p91
      %p93 = scmp.ne.s32.totalorder %s81, %s82
      %p94 = scmp.eq.s32.totalorder %s25, 1
      %p95 = por %p93, %p94
      %p97 = scmp.ne.s32.totalorder %s82, %s96
      %p98 = scmp.eq.s32.totalorder %s25, 0
      %p99 = por %p97, %p98
      %s101 = sadd.s32 %s100, 1
      %p104 = scmp.eq.s32.totalorder %s19, 1
      %p105 = scmp.ne.s32.totalorder %s100, %s102
      %p106 = scmp.eq.s32.totalorder %s19, 0
      %p107 = por %p105, %p106
      %p108 = scmp.ne.s32.totalorder %s100, %s102
      %p109 = scmp.eq.s32.totalorder %s24, 1
      %p110 = por %p108, %p109
      %p111 = scmp.ne.s32.totalorder %s102, %s103
      %p112 = scmp.eq.s32.totalorder %s24, 0
      %p113 = por %p111, %p112
      %p114 = scmp.ne.s32.totalorder %s102, %s103
      %p115 = scmp.eq.s32.totalorder %s25, 1
      %p116 = por %p114, %p115
      %p118 = scmp.ne.s32.totalorder %s103, %s117
      %p119 = scmp.eq.s32.totalorder %s25, 0
      %p120 = por %p118, %p119
      %s122 = sadd.s32 %s121, 1
      %p125 = scmp.eq.s32.totalorder %s19, 1
      %p126 = scmp.ne.s32.totalorder %s121, %s123
      %p127 = scmp.eq.s32.totalorder %s19, 0
      %p128 = por %p126, %p127
      %p129 = scmp.ne.s32.totalorder %s121, %s123
      %p130 = scmp.eq.s32.totalorder %s24, 1
      %p131 = por %p129, %p130
      %p132 = scmp.ne.s32.totalorder %s123, %s124
      %p133 = scmp.eq.s32.totalorder %s24, 0
      %p134 = por %p132, %p133
      %p135 = scmp.ne.s32.totalorder %s123, %s124
      %p136 = scmp.eq.s32.totalorder %s25, 1
      %p137 = por %p135, %p136
      %p139 = scmp.ne.s32.totalorder %s124, %s138
      %p140 = scmp.eq.s32.totalorder %s25, 0
      %p141 = por %p139, %p140
      %s143 = sadd.s32 %s142, 1
      %p146 = scmp.eq.s32.totalorder %s19, 1
      %p147 = scmp.ne.s32.totalorder %s142, %s144
      %p148 = scmp.eq.s32.totalorder %s19, 0
      %p149 = por %p147, %p148
      %p150 = scmp.ne.s32.totalorder %s142, %s144
      %p151 = scmp.eq.s32.totalorder %s24, 1
      %p152 = por %p150, %p151
      %p153 = scmp.ne.s32.totalorder %s144, %s145
      %p154 = scmp.eq.s32.totalorder %s24, 0
      %p155 = por %p153, %p154
      %p156 = scmp.ne.s32.totalorder %s144, %s145
      %p157 = scmp.eq.s32.totalorder %s25, 1
      %p158 = por %p156, %p157
      %p160 = scmp.ne.s32.totalorder %s145, %s159
      %p161 = scmp.eq.s32.totalorder %s25, 0
      %p162 = por %p160, %p161
      %s164 = sadd.s32 %s163, 1
      %p167 = scmp.eq.s32.totalorder %s19, 1
      %p168 = scmp.ne.s32.totalorder %s163, %s165
      %p169 = scmp.eq.s32.totalorder %s19, 0
      %p170 = por %p168, %p169
      %p171 = scmp.ne.s32.totalorder %s163, %s165
      %p172 = scmp.eq.s32.totalorder %s24, 1
      %p173 = por %p171, %p172
      %p174 = scmp.ne.s32.totalorder %s165, %s166
      %p175 = scmp.eq.s32.totalorder %s24, 0
      %p176 = por %p174, %p175
      %p177 = scmp.ne.s32.totalorder %s165, %s166
      %p178 = scmp.eq.s32.totalorder %s25, 1
      %p179 = por %p177, %p178
      %p181 = scmp.ne.s32.totalorder %s166, %s180
      %p182 = scmp.eq.s32.totalorder %s25, 0
      %p183 = por %p181, %p182
      %s185 = sadd.s32 %s184, 1
      %p188 = scmp.eq.s32.totalorder %s19, 1
      %p189 = scmp.ne.s32.totalorder %s184, %s186
      %p190 = scmp.eq.s32.totalorder %s19, 0
      %p191 = por %p189, %p190
      %p192 = scmp.ne.s32.totalorder %s184, %s186
      %p193 = scmp.eq.s32.totalorder %s24, 1
      %p194 = por %p192, %p193
      %p195 = scmp.ne.s32.totalorder %s186, %s187
      %p196 = scmp.eq.s32.totalorder %s24, 0
      %p197 = por %p195, %p196
      %p198 = scmp.ne.s32.totalorder %s186, %s187
      %p199 = scmp.eq.s32.totalorder %s25, 1
      %p200 = por %p198, %p199
      %p202 = scmp.ne.s32.totalorder %s187, %s201
      %p203 = scmp.eq.s32.totalorder %s25, 0
      %p204 = por %p202, %p203
      %s206 = sadd.s32 %s205, 1
      %p209 = scmp.eq.s32.totalorder %s19, 1
      %p210 = scmp.ne.s32.totalorder %s205, %s207
      %p211 = scmp.eq.s32.totalorder %s19, 0
      %p212 = por %p210, %p211
      %p213 = scmp.ne.s32.totalorder %s205, %s207
      %p214 = scmp.eq.s32.totalorder %s24, 1
      %p215 = por %p213, %p214
      %p216 = scmp.ne.s32.totalorder %s207, %s208
      %p217 = scmp.eq.s32.totalorder %s24, 0
      %p218 = por %p216, %p217
      %p219 = scmp.ne.s32.totalorder %s207, %s208
      %p220 = scmp.eq.s32.totalorder %s25, 1
      %p221 = por %p219, %p220
      %p223 = scmp.ne.s32.totalorder %s208, %s222
      %p224 = scmp.eq.s32.totalorder %s25, 0
      %p225 = por %p223, %p224
      %s227 = sadd.s32 %s226, 1
      %p230 = scmp.eq.s32.totalorder %s19, 1
      %p231 = scmp.ne.s32.totalorder %s226, %s228
      %p232 = scmp.eq.s32.totalorder %s19, 0
      %p233 = por %p231, %p232
      %p234 = scmp.ne.s32.totalorder %s226, %s228
      %p235 = scmp.eq.s32.totalorder %s24, 1
      %p236 = por %p234, %p235
      %p237 = scmp.ne.s32.totalorder %s228, %s229
      %p238 = scmp.eq.s32.totalorder %s24, 0
      %p239 = por %p237, %p238
      %p240 = scmp.ne.s32.totalorder %s228, %s229
      %p241 = scmp.eq.s32.totalorder %s25, 1
      %p242 = por %p240, %p241
      %p244 = scmp.ne.s32.totalorder %s229, %s243
      %p245 = scmp.eq.s32.totalorder %s25, 0
      %p246 = por %p244, %p245
      %s247 = ssub.s32 %s19, %s26
      %p248 = scmp.eq.s32.totalorder %s247, 0
      %s250 = sadd.s32 %s249, 1
      %s251 = scalar_select %p248, %s249, %s250
      %p254 = pneg %p248
      %p255 = scmp.eq.s32.totalorder %s19, 1
      %p256 = por %p254, %p255
      %p257 = scmp.ne.s32.totalorder %s249, %s252
      %p258 = scmp.eq.s32.totalorder %s19, 0
      %p259 = por %p257, %p258
      %p260 = scmp.ne.s32.totalorder %s249, %s252
      %p261 = scmp.eq.s32.totalorder %s24, 1
      %p262 = por %p260, %p261
      %p263 = scmp.ne.s32.totalorder %s252, %s253
      %p264 = scmp.eq.s32.totalorder %s24, 0
      %p265 = por %p263, %p264
      %p266 = scmp.ne.s32.totalorder %s252, %s253
      %p267 = scmp.eq.s32.totalorder %s25, 1
      %p268 = por %p266, %p267
      %p270 = scmp.ne.s32.totalorder %s253, %s269
      %p271 = scmp.eq.s32.totalorder %s25, 0
      %p272 = por %p270, %p271
      %p273 = scmp.le.s32.totalorder 1, %s19
      %p274 = scmp.lt.s32.totalorder %s19, 3
      %p275 = pnand %p273, %p274
      %p276 = pneg %p275
      // Predicated region
      $region9: #{tpu_custom_call.1} parent=5 // pred_check
        _
      $region10: #{tpu_custom_call.1} parent=5 // pred_check_branch
        %278 = sbr.rel (%p275) target = $region12
      $region11: #{tpu_custom_call.1} parent=5 // pred_region
        %s279 = ssub.s32 %s19, 1
        // Predicated region
        $region13: #{tpu_custom_call.1} parent=11 // pred_check
          %p280 = pneg %p92
        $region14: #{tpu_custom_call.1} parent=11 // pred_check_branch
          %282 = sbr.rel (%p280) target = $region16
        $region15: #{tpu_custom_call.1} parent=11 // pred_region
          _
        $region16: #{tpu_custom_call.1} parent=11 // pred_fallthru
          _
        // Predicated region
        $region17: #{tpu_custom_call.1} parent=11 // pred_check
          %p283 = pneg %p113
        $region18: #{tpu_custom_call.1} parent=11 // pred_check_branch
          %285 = sbr.rel (%p283) target = $region20
        $region19: #{tpu_custom_call.1} parent=11 // pred_region
          _
        $region20: #{tpu_custom_call.1} parent=11 // pred_fallthru
          _
        // Predicated region
        $region21: #{tpu_custom_call.1} parent=11 // pred_check
          %p286 = pneg %p134
        $region22: #{tpu_custom_call.1} parent=11 // pred_check_branch
          %288 = sbr.rel (%p286) target = $region24
        $region23: #{tpu_custom_call.1} parent=11 // pred_region
          _
        $region24: #{tpu_custom_call.1} parent=11 // pred_fallthru
          _
        // Predicated region
        $region25: #{tpu_custom_call.1} parent=11 // pred_check
          %p289 = pneg %p155
        $region26: #{tpu_custom_call.1} parent=11 // pred_check_branch
          %291 = sbr.rel (%p289) target = $region28
        $region27: #{tpu_custom_call.1} parent=11 // pred_region
          _
        $region28: #{tpu_custom_call.1} parent=11 // pred_fallthru
          _
        // Predicated region
        $region29: #{tpu_custom_call.1} parent=11 // pred_check
          %p292 = pneg %p176
        $region30: #{tpu_custom_call.1} parent=11 // pred_check_branch
          %294 = sbr.rel (%p292) target = $region32
        $region31: #{tpu_custom_call.1} parent=11 // pred_region
          _
        $region32: #{tpu_custom_call.1} parent=11 // pred_fallthru
          _
        // Predicated region
        $region33: #{tpu_custom_call.1} parent=11 // pred_check
          %p295 = pneg %p197
        $region34: #{tpu_custom_call.1} parent=11 // pred_check_branch
          %297 = sbr.rel (%p295) target = $region36
        $region35: #{tpu_custom_call.1} parent=11 // pred_region
          _
        $region36: #{tpu_custom_call.1} parent=11 // pred_fallthru
          _
        // Predicated region
        $region37: #{tpu_custom_call.1} parent=11 // pred_check
          %p298 = pneg %p218
        $region38: #{tpu_custom_call.1} parent=11 // pred_check_branch
          %300 = sbr.rel (%p298) target = $region40
        $region39: #{tpu_custom_call.1} parent=11 // pred_region
          _
        $region40: #{tpu_custom_call.1} parent=11 // pred_fallthru
          _
        // Predicated region
        $region41: #{tpu_custom_call.1} parent=11 // pred_check
          %p301 = pneg %p239
        $region42: #{tpu_custom_call.1} parent=11 // pred_check_branch
          %303 = sbr.rel (%p301) target = $region44
        $region43: #{tpu_custom_call.1} parent=11 // pred_region
          _
        $region44: #{tpu_custom_call.1} parent=11 // pred_fallthru
          _
      $region12: #{tpu_custom_call.1} parent=5 // pred_fallthru
        _
      %p304 = scmp.lt.s32.totalorder %s19, 2
      // Predicated region
      $region45: #{tpu_custom_call.1} parent=5 // pred_check
        %p305 = pneg %p304
      $region46: #{tpu_custom_call.1} parent=5 // pred_check_branch
        %307 = sbr.rel (%p305) target = $region48
      $region47: #{tpu_custom_call.1} parent=5 // pred_region
        // Predicated region
        $region49: #{tpu_custom_call.1} parent=47 // pred_check
          %p308 = pneg %p39
        $region50: #{tpu_custom_call.1} parent=47 // pred_check_branch
          %310 = sbr.rel (%p308) target = $region52
        $region51: #{tpu_custom_call.1} parent=47 // pred_region
          %s311 = smul.u32 16, %s19
          %p312 = scmp.lt.s32.totalorder %s311, 31
          %s313 = scalar_select %p312, %s311, 31
          %s314 = smul.addr %s313, 4
          %s315 = scalar_lea.vmem %s0, %s314
          %s316 = smul.u32 16, %s19
        $region52: #{tpu_custom_call.1} parent=47 // pred_fallthru
          _
        // Predicated region
        $region53: #{tpu_custom_call.1} parent=47 // pred_check
          %p317 = pneg %p65
        $region54: #{tpu_custom_call.1} parent=47 // pred_check_branch
          %319 = sbr.rel (%p317) target = $region56
        $region55: #{tpu_custom_call.1} parent=47 // pred_region
          %s320 = smul.u32 16, %s19
          %p321 = scmp.lt.s32.totalorder %s320, 31
          %s322 = scalar_select %p321, %s320, 31
          %s323 = smul.addr %s322, 8
          %s324 = scalar_lea.vmem %s1, %s323
          %s325 = smul.u32 16, %s19
        $region56: #{tpu_custom_call.1} parent=47 // pred_fallthru
          _
      $region48: #{tpu_custom_call.1} parent=5 // pred_fallthru
        _
      %p326 = scmp.le.s32.totalorder 1, %s19
      %p327 = scmp.lt.s32.totalorder %s19, 3
      %p328 = pnand %p326, %p327
      %p329 = pneg %p328
      // Predicated region
      $region57: #{tpu_custom_call.1} parent=5 // pred_check
        _
      $region58: #{tpu_custom_call.1} parent=5 // pred_check_branch
        %331 = sbr.rel (%p328) target = $region60
      $region59: #{tpu_custom_call.1} parent=5 // pred_region
        %s332 = ssub.s32 %s19, 1
        %s333 = smul.u32 16, %s24
        %p334 = scmp.lt.s32.totalorder %s333, 31
        %s335 = scalar_select %p334, %s333, 31
        %s336 = smul.addr %s335, 4
        %s337 = scalar_lea.vmem %s0, %s336
        %p338 = pneg %p45
        %p339 = pneg %p42
        %s340 = smul.u32 16, %s24
        %p341 = scmp.lt.s32.totalorder %s340, 31
        %s342 = scalar_select %p341, %s340, 31
        %s343 = smul.addr %s342, 8
        %s344 = scalar_lea.vmem %s1, %s343
        %p345 = pneg %p71
        %p346 = pneg %p68
        %p347 = pneg %p92
        %p348 = pneg %p89
        %p349 = pneg %p113
        %p350 = pneg %p110
        %p351 = pneg %p134
        %p352 = pneg %p131
        %p353 = pneg %p155
        %p354 = pneg %p152
        %p355 = pneg %p176
        %p356 = pneg %p173
        %p357 = pneg %p197
        %p358 = pneg %p194
        %p359 = pneg %p218
        %p360 = pneg %p215
        %p361 = pneg %p239
        %p362 = pneg %p236
        %p363 = pneg %p265
        %p364 = pneg %p262
        %s365 = sand.u32 %s252, 1
        %s366 = scalar_lea.sflag [#allocation3], %s365
        %s367 = sand.u32 %s252, 1
        %s368 = smul.addr %s367, 128
        %s369 = scalar_lea.vmem [#allocation2], %s368
        %s370 = smul.u32 16, %s24
        %p371 = scmp.lt.s32.totalorder %s370, 31
        %s372 = scalar_select %p371, %s370, 31
        %s373 = smul.addr %s372, 4
        %s374 = scalar_lea.vmem %s0, %s373
        %s375 = smul.u32 16, %s24
        %s376 = smul.u32 16, %s24
        %p377 = scmp.lt.s32.totalorder %s376, 31
        %s378 = scalar_select %p377, %s376, 31
        %s379 = smul.addr %s378, 8
        %s380 = scalar_lea.vmem %s1, %s379
        %s381 = smul.u32 16, %s24
        %s382 = smul.u32 16, %s24
        %v384 = vld [vmem:[%s374] sm:$0xf]
        %v385 = vld [vmem:[%s374 + $0x4] sm:$0xf]
        %v386 = vld [vmem:[%s374 + $0x8] sm:$0xf]
        %v387 = vld [vmem:[%s374 + $0xc] sm:$0xf]
        %v388 = vld [vmem:[%s374 + $0x10] sm:$0xf]
        %v389 = vld [vmem:[%s374 + $0x14] sm:$0xf]
        %v390 = vld [vmem:[%s374 + $0x18] sm:$0xf]
        %v391 = vld [vmem:[%s374 + $0x1c] sm:$0xf]
        %v392 = vld [vmem:[%s374 + $0x20] sm:$0xf]
        %v393 = vld [vmem:[%s374 + $0x24] sm:$0xf]
        %v394 = vld [vmem:[%s374 + $0x28] sm:$0xf]
        %v395 = vld [vmem:[%s374 + $0x2c] sm:$0xf]
        %v396 = vld [vmem:[%s374 + $0x30] sm:$0xf]
        %v397 = vld [vmem:[%s374 + $0x34] sm:$0xf]
        %v398 = vld [vmem:[%s374 + $0x38] sm:$0xf]
        %v399 = vld [vmem:[%s374 + $0x3c] sm:$0xf]
        %v400 = vld [vmem:[%s2] sm:$0xf]
        %v401 = vld [vmem:[%s2 + $0x4] sm:$0xf]
        %v402 = vld [vmem:[%s2 + $0x8] sm:$0xf]
        %v403 = vld [vmem:[%s2 + $0xc] sm:$0xf]
        %v404 = vld [vmem:[%s2 + $0x10] sm:$0xf]
        %v405 = vld [vmem:[%s2 + $0x14] sm:$0xf]
        %v406 = vld [vmem:[%s2 + $0x18] sm:$0xf]
        %v407 = vld [vmem:[%s2 + $0x1c] sm:$0xf]
        %v408 = vld [vmem:[%s3] sm:$0x1]
        %v410 = vlaneseq
        %v411 = vshrl.u32 %v410, 7
        %v412 = vsub.s32 0, %v411
        %v413 = vrot.slane %v408, %v412
        %v431 = vunpack.c.l.b16 %v384
        %v432 = vunpack.c.l.b16 %v385
        %v433 = vunpack.c.l.b16 %v386
        %v434 = vunpack.c.l.b16 %v387
        %v435 = vunpack.c.l.b16 %v388
        %v436 = vunpack.c.l.b16 %v389
        %v437 = vunpack.c.l.b16 %v390
        %v438 = vunpack.c.l.b16 %v391
        %v439 = vunpack.c.l.b16 %v392
        %v440 = vunpack.c.l.b16 %v393
        %v441 = vunpack.c.l.b16 %v394
        %v442 = vunpack.c.l.b16 %v395
        %v443 = vunpack.c.l.b16 %v396
        %v444 = vunpack.c.l.b16 %v397
        %v445 = vunpack.c.l.b16 %v398
        %v446 = vunpack.c.l.b16 %v399
        %v447 = vpack.c.b16 %v432, %v431
        %v448 = vpack.c.b16 %v434, %v433
        %v449 = vpack.c.b16 %v436, %v435
        %v450 = vpack.c.b16 %v438, %v437
        %v451 = vpack.c.b16 %v440, %v439
        %v452 = vpack.c.b16 %v442, %v441
        %v453 = vpack.c.b16 %v444, %v443
        %v454 = vpack.c.b16 %v446, %v445
        %v463 = vunpack.c.l.b16 %v400
        %v464 = vunpack.c.l.b16 %v401
        %v465 = vunpack.c.l.b16 %v402
        %v466 = vunpack.c.l.b16 %v403
        %v467 = vunpack.c.l.b16 %v404
        %v468 = vunpack.c.l.b16 %v405
        %v469 = vunpack.c.l.b16 %v406
        %v470 = vunpack.c.l.b16 %v407
        %v471 = vpack.c.b16 %v464, %v463
        %v472 = vpack.c.b16 %v466, %v465
        %v473 = vpack.c.b16 %v468, %v467
        %v474 = vpack.c.b16 %v470, %v469
        %vm479 = vcmask 523264
        %v481 = vsel %vm479, %v447, 0
        %v484 = vsel %vm479, %v448, 0
        %v487 = vsel %vm479, %v449, 0
        %v490 = vsel %vm479, %v450, 0
        %v493 = vsel %vm479, %v451, 0
        %v496 = vsel %vm479, %v452, 0
        %v499 = vsel %vm479, %v453, 0
        %v502 = vsel %vm479, %v454, 0
        %504 = vmatprep.subr.bf16.mxu0 0
        %505 = vmatpush1.bf16.msra.mxu0 %v471
        %506 = vmatprep.subr.bf16.mxu0 0
        %507 = vmatpush1.bf16.msra.mxu0 %v472
        %508 = vmatprep.subr.bf16.mxu0 0
        %509 = vmatpush1.bf16.msra.mxu0 %v473
        %510 = vmatprep.subr.bf16.mxu0 0
        %511 = vmatpush1.bf16.msra.mxu0 %v474
        %512 = vmatprep.subr.bf16.mxu0 0
        %513 = vmatpush1.bf16.msra.mxu0 0
        %514 = vmatprep.subr.bf16.mxu0 0
        %515 = vmatpush1.bf16.msra.mxu0 0
        %516 = vmatprep.subr.bf16.mxu0 0
        %517 = vmatpush1.bf16.msra.mxu0 0
        %518 = vmatprep.subr.bf16.mxu0 0
        %519 = vmatpush1.bf16.msra.mxu0 0
        %520 = vmatprep.subr.bf16.mxu0 0
        %521 = vmatpush1.bf16.msra.mxu0 0
        %522 = vmatprep.subr.bf16.mxu0 0
        %523 = vmatpush1.bf16.msra.mxu0 0
        %524 = vmatprep.subr.bf16.mxu0 0
        %525 = vmatpush1.bf16.msra.mxu0 0
        %526 = vmatprep.subr.bf16.mxu0 0
        %527 = vmatpush1.bf16.msra.mxu0 0
        %528 = vmatprep.subr.bf16.mxu0 0
        %529 = vmatpush1.bf16.msra.mxu0 0
        %530 = vmatprep.subr.bf16.mxu0 0
        %531 = vmatpush1.bf16.msra.mxu0 0
        %532 = vmatprep.subr.bf16.mxu0 0
        %533 = vmatpush1.bf16.msra.mxu0 0
        %534 = vmatprep.subr.bf16.mxu0 0
        %535 = vmatpush1.bf16.msra.mxu0 0
        %536 = vmatprep.mubr.bf16.mxu0 0
        %537 = vmatmul.mubr.bf16.gmra.mrb[0].mxu0 %v481
        %v538 = vpop.f32.mrb[0].mxu0
        %v539 = vadd.f32 %v413, %v538
        %v540 = vpop.f32.mrb[0].mxu0
        %v541 = vpop.f32.mrb[0].mxu0
        %v542 = vadd.f32 %v413, %v541
        %v543 = vpop.f32.mrb[0].mxu0
        %544 = vmatprep.mubr.bf16.mxu0 0
        %545 = vmatmul.mubr.bf16.gmra.mrb[0].mxu0 %v484
        %v546 = vpop.f32.mrb[0].mxu0
        %v547 = vadd.f32 %v413, %v546
        %v548 = vpop.f32.mrb[0].mxu0
        %v549 = vpop.f32.mrb[0].mxu0
        %v550 = vadd.f32 %v413, %v549
        %v551 = vpop.f32.mrb[0].mxu0
        %552 = vmatprep.mubr.bf16.mxu0 0
        %553 = vmatmul.mubr.bf16.gmra.mrb[0].mxu0 %v487
        %v554 = vpop.f32.mrb[0].mxu0
        %v555 = vadd.f32 %v413, %v554
        %v556 = vpop.f32.mrb[0].mxu0
        %v557 = vpop.f32.mrb[0].mxu0
        %v558 = vadd.f32 %v413, %v557
        %v559 = vpop.f32.mrb[0].mxu0
        %560 = vmatprep.mubr.bf16.mxu0 0
        %561 = vmatmul.mubr.bf16.gmra.mrb[0].mxu0 %v490
        %v562 = vpop.f32.mrb[0].mxu0
        %v563 = vadd.f32 %v413, %v562
        %v564 = vpop.f32.mrb[0].mxu0
        %v565 = vpop.f32.mrb[0].mxu0
        %v566 = vadd.f32 %v413, %v565
        %v567 = vpop.f32.mrb[0].mxu0
        %568 = vmatprep.mubr.bf16.mxu0 0
        %569 = vmatmul.mubr.bf16.gmra.mrb[0].mxu0 %v493
        %v570 = vpop.f32.mrb[0].mxu0
        %v571 = vadd.f32 %v413, %v570
        %v572 = vpop.f32.mrb[0].mxu0
        %v573 = vpop.f32.mrb[0].mxu0
        %v574 = vadd.f32 %v413, %v573
        %v575 = vpop.f32.mrb[0].mxu0
        %576 = vmatprep.mubr.bf16.mxu0 0
        %577 = vmatmul.mubr.bf16.gmra.mrb[0].mxu0 %v496
        %v578 = vpop.f32.mrb[0].mxu0
        %v579 = vadd.f32 %v413, %v578
        %v580 = vpop.f32.mrb[0].mxu0
        %v581 = vpop.f32.mrb[0].mxu0
        %v582 = vadd.f32 %v413, %v581
        %v583 = vpop.f32.mrb[0].mxu0
        %584 = vmatprep.mubr.bf16.mxu0 0
        %585 = vmatmul.mubr.bf16.gmra.mrb[0].mxu0 %v499
        %v586 = vpop.f32.mrb[0].mxu0
        %v587 = vadd.f32 %v413, %v586
        %v588 = vpop.f32.mrb[0].mxu0
        %v589 = vpop.f32.mrb[0].mxu0
        %v590 = vadd.f32 %v413, %v589
        %v591 = vpop.f32.mrb[0].mxu0
        %592 = vmatprep.mubr.bf16.mxu0 0
        %593 = vmatmul.mubr.bf16.gmra.mrb[0].mxu0 %v502
        %v594 = vpop.f32.mrb[0].mxu0
        %v595 = vadd.f32 %v413, %v594
        %v596 = vpop.f32.mrb[0].mxu0
        %v597 = vpop.f32.mrb[0].mxu0
        %v598 = vadd.f32 %v413, %v597
        %v599 = vpop.f32.mrb[0].mxu0
        %600 = vdwg.mxu0
        %v601 = vtanh.pop %v539
        %v602 = vtanh.pop %v542
        %v603 = vtanh.pop %v547
        %v604 = vtanh.pop %v550
        %v605 = vtanh.pop %v555
        %v606 = vtanh.pop %v558
        %v607 = vtanh.pop %v563
        %v608 = vtanh.pop %v566
        %v609 = vtanh.pop %v571
        %v610 = vtanh.pop %v574
        %v611 = vtanh.pop %v579
        %v612 = vtanh.pop %v582
        %v613 = vtanh.pop %v587
        %v614 = vtanh.pop %v590
        %v615 = vtanh.pop %v595
        %v616 = vtanh.pop %v598
        %v617 = vpack.c.bf16 %v602, %v601
        %v618 = vpack.c.bf16 %v604, %v603
        %v619 = vpack.c.bf16 %v606, %v605
        %v620 = vpack.c.bf16 %v608, %v607
        %v621 = vpack.c.bf16 %v610, %v609
        %v622 = vpack.c.bf16 %v612, %v611
        %v623 = vpack.c.bf16 %v614, %v613
        %v624 = vpack.c.bf16 %v616, %v615
        %v625 = vld [vmem:[%s4] sm:$0xf]
        %v626 = vld [vmem:[%s4 + $0x4] sm:$0xf]
        %v627 = vld [vmem:[%s4 + $0x8] sm:$0xf]
        %v628 = vld [vmem:[%s4 + $0xc] sm:$0xf]
        %v629 = vld [vmem:[%s5] sm:$0x1]
        %v631 = vlaneseq
        %v632 = vshrl.u32 %v631, 7
        %v633 = vsub.s32 0, %v632
        %v634 = vrot.slane %v629, %v633
        %v640 = vunpack.c.l.b16 %v625
        %v641 = vunpack.c.l.b16 %v626
        %v642 = vunpack.c.l.b16 %v627
        %v643 = vunpack.c.l.b16 %v628
        %v644 = vpack.c.b16 %v641, %v640
        %v645 = vpack.c.b16 %v643, %v642
        %vm648 = vcmask 261120
        %v650 = vsel %vm648, %v617, 0
        %v653 = vsel %vm648, %v618, 0
        %v656 = vsel %vm648, %v619, 0
        %v659 = vsel %vm648, %v620, 0
        %v662 = vsel %vm648, %v621, 0
        %v665 = vsel %vm648, %v622, 0
        %v668 = vsel %vm648, %v623, 0
        %v671 = vsel %vm648, %v624, 0
        %673 = vmatprep.subr.bf16.mxu0 0
        %674 = vmatpush1.bf16.msra.mxu0 %v644
        %675 = vmatprep.subr.bf16.mxu0 0
        %676 = vmatpush1.bf16.msra.mxu0 %v645
        %677 = vmatprep.subr.bf16.mxu0 0
        %678 = vmatpush1.bf16.msra.mxu0 0
        %679 = vmatprep.subr.bf16.mxu0 0
        %680 = vmatpush1.bf16.msra.mxu0 0
        %681 = vmatprep.subr.bf16.mxu0 0
        %682 = vmatpush1.bf16.msra.mxu0 0
        %683 = vmatprep.subr.bf16.mxu0 0
        %684 = vmatpush1.bf16.msra.mxu0 0
        %685 = vmatprep.subr.bf16.mxu0 0
        %686 = vmatpush1.bf16.msra.mxu0 0
        %687 = vmatprep.subr.bf16.mxu0 0
        %688 = vmatpush1.bf16.msra.mxu0 0
        %689 = vmatprep.subr.bf16.mxu0 0
        %690 = vmatpush1.bf16.msra.mxu0 0
        %691 = vmatprep.subr.bf16.mxu0 0
        %692 = vmatpush1.bf16.msra.mxu0 0
        %693 = vmatprep.subr.bf16.mxu0 0
        %694 = vmatpush1.bf16.msra.mxu0 0
        %695 = vmatprep.subr.bf16.mxu0 0
        %696 = vmatpush1.bf16.msra.mxu0 0
        %697 = vmatprep.subr.bf16.mxu0 0
        %698 = vmatpush1.bf16.msra.mxu0 0
        %699 = vmatprep.subr.bf16.mxu0 0
        %700 = vmatpush1.bf16.msra.mxu0 0
        %701 = vmatprep.subr.bf16.mxu0 0
        %702 = vmatpush1.bf16.msra.mxu0 0
        %703 = vmatprep.subr.bf16.mxu0 0
        %704 = vmatpush1.bf16.msra.mxu0 0
        %705 = vmatprep.mubr.bf16.mxu0 0
        %706 = vmatmul.mubr.bf16.gmra.mrb[0].mxu0 %v650
        %v707 = vpop.f32.mrb[0].mxu0
        %v708 = vadd.f32 %v634, %v707
        %v709 = vpop.f32.mrb[0].mxu0
        %v710 = vpop.f32.mrb[0].mxu0
        %v711 = vadd.f32 %v634, %v710
        %v712 = vpop.f32.mrb[0].mxu0
        %713 = vmatprep.mubr.bf16.mxu0 0
        %714 = vmatmul.mubr.bf16.gmra.mrb[0].mxu0 %v653
        %v715 = vpop.f32.mrb[0].mxu0
        %v716 = vadd.f32 %v634, %v715
        %v717 = vpop.f32.mrb[0].mxu0
        %v718 = vpop.f32.mrb[0].mxu0
        %v719 = vadd.f32 %v634, %v718
        %v720 = vpop.f32.mrb[0].mxu0
        %721 = vmatprep.mubr.bf16.mxu0 0
        %722 = vmatmul.mubr.bf16.gmra.mrb[0].mxu0 %v656
        %v723 = vpop.f32.mrb[0].mxu0
        %v724 = vadd.f32 %v634, %v723
        %v725 = vpop.f32.mrb[0].mxu0
        %v726 = vpop.f32.mrb[0].mxu0
        %v727 = vadd.f32 %v634, %v726
        %v728 = vpop.f32.mrb[0].mxu0
        %729 = vmatprep.mubr.bf16.mxu0 0
        %730 = vmatmul.mubr.bf16.gmra.mrb[0].mxu0 %v659
        %v731 = vpop.f32.mrb[0].mxu0
        %v732 = vadd.f32 %v634, %v731
        %v733 = vpop.f32.mrb[0].mxu0
        %v734 = vpop.f32.mrb[0].mxu0
        %v735 = vadd.f32 %v634, %v734
        %v736 = vpop.f32.mrb[0].mxu0
        %737 = vmatprep.mubr.bf16.mxu0 0
        %738 = vmatmul.mubr.bf16.gmra.mrb[0].mxu0 %v662
        %v739 = vpop.f32.mrb[0].mxu0
        %v740 = vadd.f32 %v634, %v739
        %v741 = vpop.f32.mrb[0].mxu0
        %v742 = vpop.f32.mrb[0].mxu0
        %v743 = vadd.f32 %v634, %v742
        %v744 = vpop.f32.mrb[0].mxu0
        %745 = vmatprep.mubr.bf16.mxu0 0
        %746 = vmatmul.mubr.bf16.gmra.mrb[0].mxu0 %v665
        %v747 = vpop.f32.mrb[0].mxu0
        %v748 = vadd.f32 %v634, %v747
        %v749 = vpop.f32.mrb[0].mxu0
        %v750 = vpop.f32.mrb[0].mxu0
        %v751 = vadd.f32 %v634, %v750
        %v752 = vpop.f32.mrb[0].mxu0
        %753 = vmatprep.mubr.bf16.mxu0 0
        %754 = vmatmul.mubr.bf16.gmra.mrb[0].mxu0 %v668
        %v755 = vpop.f32.mrb[0].mxu0
        %v756 = vadd.f32 %v634, %v755
        %v757 = vpop.f32.mrb[0].mxu0
        %v758 = vpop.f32.mrb[0].mxu0
        %v759 = vadd.f32 %v634, %v758
        %v760 = vpop.f32.mrb[0].mxu0
        %761 = vmatprep.mubr.bf16.mxu0 0
        %762 = vmatmul.mubr.bf16.gmra.mrb[0].mxu0 %v671
        %v763 = vpop.f32.mrb[0].mxu0
        %v764 = vadd.f32 %v634, %v763
        %v765 = vpop.f32.mrb[0].mxu0
        %v766 = vpop.f32.mrb[0].mxu0
        %v767 = vadd.f32 %v634, %v766
        %v768 = vpop.f32.mrb[0].mxu0
        %769 = vdwg.mxu0
        %v770 = vmul.f32 %v708, 0.5
        %v771 = vmul.f32 %v711, 0.5
        %v772 = vmul.f32 %v716, 0.5
        %v773 = vmul.f32 %v719, 0.5
        %v774 = vmul.f32 %v724, 0.5
        %v775 = vmul.f32 %v727, 0.5
        %v776 = vmul.f32 %v732, 0.5
        %v777 = vmul.f32 %v735, 0.5
        %v778 = vmul.f32 %v740, 0.5
        %v779 = vmul.f32 %v743, 0.5
        %v780 = vmul.f32 %v748, 0.5
        %v781 = vmul.f32 %v751, 0.5
        %v782 = vmul.f32 %v756, 0.5
        %v783 = vmul.f32 %v759, 0.5
        %v784 = vmul.f32 %v764, 0.5
        %v785 = vmul.f32 %v767, 0.5
        %v786 = vmul.f32 %v770, 1.442695
        %v787 = vpow.pop %v786
        %v788 = vmul.f32 %v771, 1.442695
        %v789 = vpow.pop %v788
        %v790 = vmul.f32 %v772, 1.442695
        %v791 = vpow.pop %v790
        %v792 = vmul.f32 %v773, 1.442695
        %v793 = vpow.pop %v792
        %v794 = vmul.f32 %v774, 1.442695
        %v795 = vpow.pop %v794
        %v796 = vmul.f32 %v775, 1.442695
        %v797 = vpow.pop %v796
        %v798 = vmul.f32 %v776, 1.442695
        %v799 = vpow.pop %v798
        %v800 = vmul.f32 %v777, 1.442695
        %v801 = vpow.pop %v800
        %v802 = vmul.f32 %v778, 1.442695
        %v803 = vpow.pop %v802
        %v804 = vmul.f32 %v779, 1.442695
        %v805 = vpow.pop %v804
        %v806 = vmul.f32 %v780, 1.442695
        %v807 = vpow.pop %v806
        %v808 = vmul.f32 %v781, 1.442695
        %v809 = vpow.pop %v808
        %v810 = vmul.f32 %v782, 1.442695
        %v811 = vpow.pop %v810
        %v812 = vmul.f32 %v783, 1.442695
        %v813 = vpow.pop %v812
        %v814 = vmul.f32 %v784, 1.442695
        %v815 = vpow.pop %v814
        %v816 = vmul.f32 %v785, 1.442695
        %v817 = vpow.pop %v816
        %v818 = vld [vmem:[%s380] sm:$0xff]
        %v819 = vld [vmem:[%s380 + $0x8] sm:$0xff]
        %v820 = vld [vmem:[%s380 + $0x10] sm:$0xff]
        %v821 = vld [vmem:[%s380 + $0x18] sm:$0xff]
        %v822 = vld [vmem:[%s380 + $0x20] sm:$0xff]
        %v823 = vld [vmem:[%s380 + $0x28] sm:$0xff]
        %v824 = vld [vmem:[%s380 + $0x30] sm:$0xff]
        %v825 = vld [vmem:[%s380 + $0x38] sm:$0xff]
        %v826 = vld [vmem:[%s380 + $0x40] sm:$0xff]
        %v827 = vld [vmem:[%s380 + $0x48] sm:$0xff]
        %v828 = vld [vmem:[%s380 + $0x50] sm:$0xff]
        %v829 = vld [vmem:[%s380 + $0x58] sm:$0xff]
        %v830 = vld [vmem:[%s380 + $0x60] sm:$0xff]
        %v831 = vld [vmem:[%s380 + $0x68] sm:$0xff]
        %v832 = vld [vmem:[%s380 + $0x70] sm:$0xff]
        %v833 = vld [vmem:[%s380 + $0x78] sm:$0xff]
        %850 = vrot.lane.b32.xlu0 %v787, 112
        %v851 = vpop.permute.xlu0 %850
        %852 = vrot.lane.b32.xlu0 %v789, 112
        %v853 = vpop.permute.xlu0 %852
        %854 = vrot.lane.b32.xlu0 %v791, 112
        %v855 = vpop.permute.xlu0 %854
        %856 = vrot.lane.b32.xlu0 %v793, 112
        %v857 = vpop.permute.xlu0 %856
        %858 = vrot.lane.b32.xlu0 %v795, 112
        %v859 = vpop.permute.xlu0 %858
        %860 = vrot.lane.b32.xlu0 %v797, 112
        %v861 = vpop.permute.xlu0 %860
        %862 = vrot.lane.b32.xlu0 %v799, 112
        %v863 = vpop.permute.xlu0 %862
        %864 = vrot.lane.b32.xlu0 %v801, 112
        %v865 = vpop.permute.xlu0 %864
        %866 = vrot.lane.b32.xlu0 %v803, 112
        %v867 = vpop.permute.xlu0 %866
        %868 = vrot.lane.b32.xlu0 %v805, 112
        %v869 = vpop.permute.xlu0 %868
        %870 = vrot.lane.b32.xlu0 %v807, 112
        %v871 = vpop.permute.xlu0 %870
        %872 = vrot.lane.b32.xlu0 %v809, 112
        %v873 = vpop.permute.xlu0 %872
        %874 = vrot.lane.b32.xlu0 %v811, 112
        %v875 = vpop.permute.xlu0 %874
        %876 = vrot.lane.b32.xlu0 %v813, 112
        %v877 = vpop.permute.xlu0 %876
        %878 = vrot.lane.b32.xlu0 %v815, 112
        %v879 = vpop.permute.xlu0 %878
        %880 = vrot.lane.b32.xlu0 %v817, 112
        %v881 = vpop.permute.xlu0 %880
        %v898 = vmul.f32 %v818, %v851
        %v899 = vmul.f32 %v819, %v853
        %v900 = vmul.f32 %v820, %v855
        %v901 = vmul.f32 %v821, %v857
        %v902 = vmul.f32 %v822, %v859
        %v903 = vmul.f32 %v823, %v861
        %v904 = vmul.f32 %v824, %v863
        %v905 = vmul.f32 %v825, %v865
        %v906 = vmul.f32 %v826, %v867
        %v907 = vmul.f32 %v827, %v869
        %v908 = vmul.f32 %v828, %v871
        %v909 = vmul.f32 %v829, %v873
        %v910 = vmul.f32 %v830, %v875
        %v911 = vmul.f32 %v831, %v877
        %v912 = vmul.f32 %v832, %v879
        %v913 = vmul.f32 %v833, %v881
        %v914 = vadd.f32 %v898, %v708
        %v915 = vadd.f32 %v899, %v711
        %v916 = vadd.f32 %v900, %v716
        %v917 = vadd.f32 %v901, %v719
        %v918 = vadd.f32 %v902, %v724
        %v919 = vadd.f32 %v903, %v727
        %v920 = vadd.f32 %v904, %v732
        %v921 = vadd.f32 %v905, %v735
        %v922 = vadd.f32 %v906, %v740
        %v923 = vadd.f32 %v907, %v743
        %v924 = vadd.f32 %v908, %v748
        %v925 = vadd.f32 %v909, %v751
        %v926 = vadd.f32 %v910, %v756
        %v927 = vadd.f32 %v911, %v759
        %v928 = vadd.f32 %v912, %v764
        %v929 = vadd.f32 %v913, %v767
        %v930 = vpack.c.bf16 %v915, %v914
        %v931 = vpack.c.bf16 %v917, %v916
        %v932 = vpack.c.bf16 %v919, %v918
        %v933 = vpack.c.bf16 %v921, %v920
        %v934 = vpack.c.bf16 %v923, %v922
        %v935 = vpack.c.bf16 %v925, %v924
        %v936 = vpack.c.bf16 %v927, %v926
        %v937 = vpack.c.bf16 %v929, %v928
        %v938 = vld [vmem:[%s6] sm:$0xf]
        %v939 = vld [vmem:[%s6 + $0x4] sm:$0xf]
        %v940 = vld [vmem:[%s7] sm:$0x1]
        %v942 = vlaneseq
        %v943 = vshrl.u32 %v942, 7
        %v944 = vsub.s32 0, %v943
        %v945 = vrot.slane %v940, %v944
        %v949 = vunpack.c.l.b16 %v938
        %v950 = vunpack.c.l.b16 %v939
        %v951 = vpack.c.b16 %v950, %v949
        %vm953 = vcmask 130048
        %v955 = vsel %vm953, %v930, 0
        %v958 = vsel %vm953, %v931, 0
        %v961 = vsel %vm953, %v932, 0
        %v964 = vsel %vm953, %v933, 0
        %v967 = vsel %vm953, %v934, 0
        %v970 = vsel %vm953, %v935, 0
        %v973 = vsel %vm953, %v936, 0
        %v976 = vsel %vm953, %v937, 0
        %978 = vmatprep.subr.bf16.mxu0 0
        %979 = vmatpush1.bf16.msra.mxu0 %v951
        %980 = vmatprep.subr.bf16.mxu0 0
        %981 = vmatpush1.bf16.msra.mxu0 0
        %982 = vmatprep.subr.bf16.mxu0 0
        %983 = vmatpush1.bf16.msra.mxu0 0
        %984 = vmatprep.subr.bf16.mxu0 0
        %985 = vmatpush1.bf16.msra.mxu0 0
        %986 = vmatprep.subr.bf16.mxu0 0
        %987 = vmatpush1.bf16.msra.mxu0 0
        %988 = vmatprep.subr.bf16.mxu0 0
        %989 = vmatpush1.bf16.msra.mxu0 0
        %990 = vmatprep.subr.bf16.mxu0 0
        %991 = vmatpush1.bf16.msra.mxu0 0
        %992 = vmatprep.subr.bf16.mxu0 0
        %993 = vmatpush1.bf16.msra.mxu0 0
        %994 = vmatprep.subr.bf16.mxu0 0
        %995 = vmatpush1.bf16.msra.mxu0 0
        %996 = vmatprep.subr.bf16.mxu0 0
        %997 = vmatpush1.bf16.msra.mxu0 0
        %998 = vmatprep.subr.bf16.mxu0 0
        %999 = vmatpush1.bf16.msra.mxu0 0
        %1000 = vmatprep.subr.bf16.mxu0 0
        %1001 = vmatpush1.bf16.msra.mxu0 0
        %1002 = vmatprep.subr.bf16.mxu0 0
        %1003 = vmatpush1.bf16.msra.mxu0 0
        %1004 = vmatprep.subr.bf16.mxu0 0
        %1005 = vmatpush1.bf16.msra.mxu0 0
        %1006 = vmatprep.subr.bf16.mxu0 0
        %1007 = vmatpush1.bf16.msra.mxu0 0
        %1008 = vmatprep.subr.bf16.mxu0 0
        %1009 = vmatpush1.bf16.msra.mxu0 0
        %1010 = vmatprep.mubr.bf16.mxu0 0
        %1011 = vmatmul.mubr.bf16.gmra.mrb[0].mxu0 %v955
        %v1012 = vpop.f32.mrb[0].mxu0
        %v1013 = vadd.f32 %v945, %v1012
        %v1014 = vpop.f32.mrb[0].mxu0
        %v1015 = vpop.f32.mrb[0].mxu0
        %v1016 = vadd.f32 %v945, %v1015
        %v1017 = vpop.f32.mrb[0].mxu0
        %1018 = vmatprep.mubr.bf16.mxu0 0
        %1019 = vmatmul.mubr.bf16.gmra.mrb[0].mxu0 %v958
        %v1020 = vpop.f32.mrb[0].mxu0
        %v1021 = vadd.f32 %v945, %v1020
        %v1022 = vpop.f32.mrb[0].mxu0
        %v1023 = vpop.f32.mrb[0].mxu0
        %v1024 = vadd.f32 %v945, %v1023
        %v1025 = vpop.f32.mrb[0].mxu0
        %1026 = vmatprep.mubr.bf16.mxu0 0
        %1027 = vmatmul.mubr.bf16.gmra.mrb[0].mxu0 %v961
        %v1028 = vpop.f32.mrb[0].mxu0
        %v1029 = vadd.f32 %v945, %v1028
        %v1030 = vpop.f32.mrb[0].mxu0
        %v1031 = vpop.f32.mrb[0].mxu0
        %v1032 = vadd.f32 %v945, %v1031
        %v1033 = vpop.f32.mrb[0].mxu0
        %1034 = vmatprep.mubr.bf16.mxu0 0
        %1035 = vmatmul.mubr.bf16.gmra.mrb[0].mxu0 %v964
        %v1036 = vpop.f32.mrb[0].mxu0
        %v1037 = vadd.f32 %v945, %v1036
        %v1038 = vpop.f32.mrb[0].mxu0
        %v1039 = vpop.f32.mrb[0].mxu0
        %v1040 = vadd.f32 %v945, %v1039
        %v1041 = vpop.f32.mrb[0].mxu0
        %1042 = vmatprep.mubr.bf16.mxu0 0
        %1043 = vmatmul.mubr.bf16.gmra.mrb[0].mxu0 %v967
        %v1044 = vpop.f32.mrb[0].mxu0
        %v1045 = vadd.f32 %v945, %v1044
        %v1046 = vpop.f32.mrb[0].mxu0
        %v1047 = vpop.f32.mrb[0].mxu0
        %v1048 = vadd.f32 %v945, %v1047
        %v1049 = vpop.f32.mrb[0].mxu0
        %1050 = vmatprep.mubr.bf16.mxu0 0
        %1051 = vmatmul.mubr.bf16.gmra.mrb[0].mxu0 %v970
        %v1052 = vpop.f32.mrb[0].mxu0
        %v1053 = vadd.f32 %v945, %v1052
        %v1054 = vpop.f32.mrb[0].mxu0
        %v1055 = vpop.f32.mrb[0].mxu0
        %v1056 = vadd.f32 %v945, %v1055
        %v1057 = vpop.f32.mrb[0].mxu0
        %1058 = vmatprep.mubr.bf16.mxu0 0
        %1059 = vmatmul.mubr.bf16.gmra.mrb[0].mxu0 %v973
        %v1060 = vpop.f32.mrb[0].mxu0
        %v1061 = vadd.f32 %v945, %v1060
        %v1062 = vpop.f32.mrb[0].mxu0
        %v1063 = vpop.f32.mrb[0].mxu0
        %v1064 = vadd.f32 %v945, %v1063
        %v1065 = vpop.f32.mrb[0].mxu0
        %1066 = vmatprep.mubr.bf16.mxu0 0
        %1067 = vmatmul.mubr.bf16.gmra.mrb[0].mxu0 %v976
        %v1068 = vpop.f32.mrb[0].mxu0
        %v1069 = vadd.f32 %v945, %v1068
        %v1070 = vpop.f32.mrb[0].mxu0
        %v1071 = vpop.f32.mrb[0].mxu0
        %v1072 = vadd.f32 %v945, %v1071
        %v1073 = vpop.f32.mrb[0].mxu0
        %1074 = vdwg.mxu0
        %v1075 = vtanh.pop %v1013
        %v1076 = vtanh.pop %v1016
        %v1077 = vtanh.pop %v1021
        %v1078 = vtanh.pop %v1024
        %v1079 = vtanh.pop %v1029
        %v1080 = vtanh.pop %v1032
        %v1081 = vtanh.pop %v1037
        %v1082 = vtanh.pop %v1040
        %v1083 = vtanh.pop %v1045
        %v1084 = vtanh.pop %v1048
        %v1085 = vtanh.pop %v1053
        %v1086 = vtanh.pop %v1056
        %v1087 = vtanh.pop %v1061
        %v1088 = vtanh.pop %v1064
        %v1089 = vtanh.pop %v1069
        %v1090 = vtanh.pop %v1072
        %v1091 = vpack.c.bf16 %v1076, %v1075
        %v1092 = vpack.c.bf16 %v1078, %v1077
        %v1093 = vpack.c.bf16 %v1080, %v1079
        %v1094 = vpack.c.bf16 %v1082, %v1081
        %v1095 = vpack.c.bf16 %v1084, %v1083
        %v1096 = vpack.c.bf16 %v1086, %v1085
        %v1097 = vpack.c.bf16 %v1088, %v1087
        %v1098 = vpack.c.bf16 %v1090, %v1089
        %v1099 = vld [vmem:[%s8] sm:$0xf]
        %v1100 = vld [vmem:[%s8 + $0x4] sm:$0xf]
        %v1101 = vld [vmem:[%s8 + $0x8] sm:$0xf]
        %v1102 = vld [vmem:[%s8 + $0xc] sm:$0xf]
        %v1103 = vld [vmem:[%s9] sm:$0x1]
        %v1105 = vlaneseq
        %v1106 = vshrl.u32 %v1105, 7
        %v1107 = vsub.s32 0, %v1106
        %v1108 = vrot.slane %v1103, %v1107
        %v1114 = vunpack.c.l.b16 %v1099
        %v1115 = vunpack.c.l.b16 %v1100
        %v1116 = vunpack.c.l.b16 %v1101
        %v1117 = vunpack.c.l.b16 %v1102
        %v1118 = vpack.c.b16 %v1115, %v1114
        %v1119 = vpack.c.b16 %v1117, %v1116
        %v1123 = vsel %vm648, %v1091, 0
        %v1126 = vsel %vm648, %v1092, 0
        %v1129 = vsel %vm648, %v1093, 0
        %v1132 = vsel %vm648, %v1094, 0
        %v1135 = vsel %vm648, %v1095, 0
        %v1138 = vsel %vm648, %v1096, 0
        %v1141 = vsel %vm648, %v1097, 0
        %v1144 = vsel %vm648, %v1098, 0
        %1146 = vmatprep.subr.bf16.mxu0 0
        %1147 = vmatpush1.bf16.msra.mxu0 %v1118
        %1148 = vmatprep.subr.bf16.mxu0 0
        %1149 = vmatpush1.bf16.msra.mxu0 %v1119
        %1150 = vmatprep.subr.bf16.mxu0 0
        %1151 = vmatpush1.bf16.msra.mxu0 0
        %1152 = vmatprep.subr.bf16.mxu0 0
        %1153 = vmatpush1.bf16.msra.mxu0 0
        %1154 = vmatprep.subr.bf16.mxu0 0
        %1155 = vmatpush1.bf16.msra.mxu0 0
        %1156 = vmatprep.subr.bf16.mxu0 0
        %1157 = vmatpush1.bf16.msra.mxu0 0
        %1158 = vmatprep.subr.bf16.mxu0 0
        %1159 = vmatpush1.bf16.msra.mxu0 0
        %1160 = vmatprep.subr.bf16.mxu0 0
        %1161 = vmatpush1.bf16.msra.mxu0 0
        %1162 = vmatprep.subr.bf16.mxu0 0
        %1163 = vmatpush1.bf16.msra.mxu0 0
        %1164 = vmatprep.subr.bf16.mxu0 0
        %1165 = vmatpush1.bf16.msra.mxu0 0
        %1166 = vmatprep.subr.bf16.mxu0 0
        %1167 = vmatpush1.bf16.msra.mxu0 0
        %1168 = vmatprep.subr.bf16.mxu0 0
        %1169 = vmatpush1.bf16.msra.mxu0 0
        %1170 = vmatprep.subr.bf16.mxu0 0
        %1171 = vmatpush1.bf16.msra.mxu0 0
        %1172 = vmatprep.subr.bf16.mxu0 0
        %1173 = vmatpush1.bf16.msra.mxu0 0
        %1174 = vmatprep.subr.bf16.mxu0 0
        %1175 = vmatpush1.bf16.msra.mxu0 0
        %1176 = vmatprep.subr.bf16.mxu0 0
        %1177 = vmatpush1.bf16.msra.mxu0 0
        %1178 = vmatprep.mubr.bf16.mxu0 0
        %1179 = vmatmul.mubr.bf16.gmra.mrb[0].mxu0 %v1123
        %v1180 = vpop.f32.mrb[0].mxu0
        %v1181 = vadd.f32 %v1108, %v1180
        %v1182 = vpop.f32.mrb[0].mxu0
        %v1183 = vpop.f32.mrb[0].mxu0
        %v1184 = vadd.f32 %v1108, %v1183
        %v1185 = vpop.f32.mrb[0].mxu0
        %1186 = vmatprep.mubr.bf16.mxu0 0
        %1187 = vmatmul.mubr.bf16.gmra.mrb[0].mxu0 %v1126
        %v1188 = vpop.f32.mrb[0].mxu0
        %v1189 = vadd.f32 %v1108, %v1188
        %v1190 = vpop.f32.mrb[0].mxu0
        %v1191 = vpop.f32.mrb[0].mxu0
        %v1192 = vadd.f32 %v1108, %v1191
        %v1193 = vpop.f32.mrb[0].mxu0
        %1194 = vmatprep.mubr.bf16.mxu0 0
        %1195 = vmatmul.mubr.bf16.gmra.mrb[0].mxu0 %v1129
        %v1196 = vpop.f32.mrb[0].mxu0
        %v1197 = vadd.f32 %v1108, %v1196
        %v1198 = vpop.f32.mrb[0].mxu0
        %v1199 = vpop.f32.mrb[0].mxu0
        %v1200 = vadd.f32 %v1108, %v1199
        %v1201 = vpop.f32.mrb[0].mxu0
        %1202 = vmatprep.mubr.bf16.mxu0 0
        %1203 = vmatmul.mubr.bf16.gmra.mrb[0].mxu0 %v1132
        %v1204 = vpop.f32.mrb[0].mxu0
        %v1205 = vadd.f32 %v1108, %v1204
        %v1206 = vpop.f32.mrb[0].mxu0
        %v1207 = vpop.f32.mrb[0].mxu0
        %v1208 = vadd.f32 %v1108, %v1207
        %v1209 = vpop.f32.mrb[0].mxu0
        %1210 = vmatprep.mubr.bf16.mxu0 0
        %1211 = vmatmul.mubr.bf16.gmra.mrb[0].mxu0 %v1135
        %v1212 = vpop.f32.mrb[0].mxu0
        %v1213 = vadd.f32 %v1108, %v1212
        %v1214 = vpop.f32.mrb[0].mxu0
        %v1215 = vpop.f32.mrb[0].mxu0
        %v1216 = vadd.f32 %v1108, %v1215
        %v1217 = vpop.f32.mrb[0].mxu0
        %1218 = vmatprep.mubr.bf16.mxu0 0
        %1219 = vmatmul.mubr.bf16.gmra.mrb[0].mxu0 %v1138
        %v1220 = vpop.f32.mrb[0].mxu0
        %v1221 = vadd.f32 %v1108, %v1220
        %v1222 = vpop.f32.mrb[0].mxu0
        %v1223 = vpop.f32.mrb[0].mxu0
        %v1224 = vadd.f32 %v1108, %v1223
        %v1225 = vpop.f32.mrb[0].mxu0
        %1226 = vmatprep.mubr.bf16.mxu0 0
        %1227 = vmatmul.mubr.bf16.gmra.mrb[0].mxu0 %v1141
        %v1228 = vpop.f32.mrb[0].mxu0
        %v1229 = vadd.f32 %v1108, %v1228
        %v1230 = vpop.f32.mrb[0].mxu0
        %v1231 = vpop.f32.mrb[0].mxu0
        %v1232 = vadd.f32 %v1108, %v1231
        %v1233 = vpop.f32.mrb[0].mxu0
        %1234 = vmatprep.mubr.bf16.mxu0 0
        %1235 = vmatmul.mubr.bf16.gmra.mrb[0].mxu0 %v1144
        %v1236 = vpop.f32.mrb[0].mxu0
        %v1237 = vadd.f32 %v1108, %v1236
        %v1238 = vpop.f32.mrb[0].mxu0
        %v1239 = vpop.f32.mrb[0].mxu0
        %v1240 = vadd.f32 %v1108, %v1239
        %v1241 = vpop.f32.mrb[0].mxu0
        %1242 = vdwg.mxu0
        %v1243 = vxor.u32 %v1181, 2147483648
        %v1244 = vxor.u32 %v1184, 2147483648
        %v1245 = vxor.u32 %v1189, 2147483648
        %v1246 = vxor.u32 %v1192, 2147483648
        %v1247 = vxor.u32 %v1197, 2147483648
        %v1248 = vxor.u32 %v1200, 2147483648
        %v1249 = vxor.u32 %v1205, 2147483648
        %v1250 = vxor.u32 %v1208, 2147483648
        %v1251 = vxor.u32 %v1213, 2147483648
        %v1252 = vxor.u32 %v1216, 2147483648
        %v1253 = vxor.u32 %v1221, 2147483648
        %v1254 = vxor.u32 %v1224, 2147483648
        %v1255 = vxor.u32 %v1229, 2147483648
        %v1256 = vxor.u32 %v1232, 2147483648
        %v1257 = vxor.u32 %v1237, 2147483648
        %v1258 = vxor.u32 %v1240, 2147483648
        %v1259 = vmul.f32 %v1243, 1.442695
        %v1260 = vpow.pop %v1259
        %v1261 = vmul.f32 %v1244, 1.442695
        %v1262 = vpow.pop %v1261
        %v1263 = vmul.f32 %v1245, 1.442695
        %v1264 = vpow.pop %v1263
        %v1265 = vmul.f32 %v1246, 1.442695
        %v1266 = vpow.pop %v1265
        %v1267 = vmul.f32 %v1247, 1.442695
        %v1268 = vpow.pop %v1267
        %v1269 = vmul.f32 %v1248, 1.442695
        %v1270 = vpow.pop %v1269
        %v1271 = vmul.f32 %v1249, 1.442695
        %v1272 = vpow.pop %v1271
        %v1273 = vmul.f32 %v1250, 1.442695
        %v1274 = vpow.pop %v1273
        %v1275 = vmul.f32 %v1251, 1.442695
        %v1276 = vpow.pop %v1275
        %v1277 = vmul.f32 %v1252, 1.442695
        %v1278 = vpow.pop %v1277
        %v1279 = vmul.f32 %v1253, 1.442695
        %v1280 = vpow.pop %v1279
        %v1281 = vmul.f32 %v1254, 1.442695
        %v1282 = vpow.pop %v1281
        %v1283 = vmul.f32 %v1255, 1.442695
        %v1284 = vpow.pop %v1283
        %v1285 = vmul.f32 %v1256, 1.442695
        %v1286 = vpow.pop %v1285
        %v1287 = vmul.f32 %v1257, 1.442695
        %v1288 = vpow.pop %v1287
        %v1289 = vmul.f32 %v1258, 1.442695
        %v1290 = vpow.pop %v1289
        %v1291 = vadd.f32 %v1260, 1.0
        %v1292 = vadd.f32 %v1262, 1.0
        %v1293 = vadd.f32 %v1264, 1.0
        %v1294 = vadd.f32 %v1266, 1.0
        %v1295 = vadd.f32 %v1268, 1.0
        %v1296 = vadd.f32 %v1270, 1.0
        %v1297 = vadd.f32 %v1272, 1.0
        %v1298 = vadd.f32 %v1274, 1.0
        %v1299 = vadd.f32 %v1276, 1.0
        %v1300 = vadd.f32 %v1278, 1.0
        %v1301 = vadd.f32 %v1280, 1.0
        %v1302 = vadd.f32 %v1282, 1.0
        %v1303 = vadd.f32 %v1284, 1.0
        %v1304 = vadd.f32 %v1286, 1.0
        %v1305 = vadd.f32 %v1288, 1.0
        %v1306 = vadd.f32 %v1290, 1.0
        %v1307 = vrcp.pop %v1291
        %v1308 = vmul.f32 1.0, %v1307
        %v1309 = vrcp.pop %v1292
        %v1310 = vmul.f32 1.0, %v1309
        %v1311 = vrcp.pop %v1293
        %v1312 = vmul.f32 1.0, %v1311
        %v1313 = vrcp.pop %v1294
        %v1314 = vmul.f32 1.0, %v1313
        %v1315 = vrcp.pop %v1295
        %v1316 = vmul.f32 1.0, %v1315
        %v1317 = vrcp.pop %v1296
        %v1318 = vmul.f32 1.0, %v1317
        %v1319 = vrcp.pop %v1297
        %v1320 = vmul.f32 1.0, %v1319
        %v1321 = vrcp.pop %v1298
        %v1322 = vmul.f32 1.0, %v1321
        %v1323 = vrcp.pop %v1299
        %v1324 = vmul.f32 1.0, %v1323
        %v1325 = vrcp.pop %v1300
        %v1326 = vmul.f32 1.0, %v1325
        %v1327 = vrcp.pop %v1301
        %v1328 = vmul.f32 1.0, %v1327
        %v1329 = vrcp.pop %v1302
        %v1330 = vmul.f32 1.0, %v1329
        %v1331 = vrcp.pop %v1303
        %v1332 = vmul.f32 1.0, %v1331
        %v1333 = vrcp.pop %v1304
        %v1334 = vmul.f32 1.0, %v1333
        %v1335 = vrcp.pop %v1305
        %v1336 = vmul.f32 1.0, %v1335
        %v1337 = vrcp.pop %v1306
        %v1338 = vmul.f32 1.0, %v1337
        %1339 = vst.msk [vmem:[%s369] sm:$0xff] %vm479, %v1308
        %1340 = vst.msk [vmem:[%s369 + $0x8] sm:$0xff] %vm479, %v1310
        %1341 = vst.msk [vmem:[%s369 + $0x10] sm:$0xff] %vm479, %v1312
        %1342 = vst.msk [vmem:[%s369 + $0x18] sm:$0xff] %vm479, %v1314
        %1343 = vst.msk [vmem:[%s369 + $0x20] sm:$0xff] %vm479, %v1316
        %1344 = vst.msk [vmem:[%s369 + $0x28] sm:$0xff] %vm479, %v1318
        %1345 = vst.msk [vmem:[%s369 + $0x30] sm:$0xff] %vm479, %v1320
        %1346 = vst.msk [vmem:[%s369 + $0x38] sm:$0xff] %vm479, %v1322
        %1347 = vst.msk [vmem:[%s369 + $0x40] sm:$0xff] %vm479, %v1324
        %1348 = vst.msk [vmem:[%s369 + $0x48] sm:$0xff] %vm479, %v1326
        %1349 = vst.msk [vmem:[%s369 + $0x50] sm:$0xff] %vm479, %v1328
        %1350 = vst.msk [vmem:[%s369 + $0x58] sm:$0xff] %vm479, %v1330
        %1351 = vst.msk [vmem:[%s369 + $0x60] sm:$0xff] %vm479, %v1332
        %1352 = vst.msk [vmem:[%s369 + $0x68] sm:$0xff] %vm479, %v1334
        %1353 = vst.msk [vmem:[%s369 + $0x70] sm:$0xff] %vm479, %v1336
        %1354 = vst.msk [vmem:[%s369 + $0x78] sm:$0xff] %vm479, %v1338
        %1371 = vrot.lane.b32.xlu0 %v708, 64
        %v1372 = vpop.permute.xlu0 %1371
        %1373 = vrot.lane.b32.xlu0 %v711, 64
        %v1374 = vpop.permute.xlu0 %1373
        %1375 = vrot.lane.b32.xlu0 %v716, 64
        %v1376 = vpop.permute.xlu0 %1375
        %1377 = vrot.lane.b32.xlu0 %v719, 64
        %v1378 = vpop.permute.xlu0 %1377
        %1379 = vrot.lane.b32.xlu0 %v724, 64
        %v1380 = vpop.permute.xlu0 %1379
        %1381 = vrot.lane.b32.xlu0 %v727, 64
        %v1382 = vpop.permute.xlu0 %1381
        %1383 = vrot.lane.b32.xlu0 %v732, 64
        %v1384 = vpop.permute.xlu0 %1383
        %1385 = vrot.lane.b32.xlu0 %v735, 64
        %v1386 = vpop.permute.xlu0 %1385
        %1387 = vrot.lane.b32.xlu0 %v740, 64
        %v1388 = vpop.permute.xlu0 %1387
        %1389 = vrot.lane.b32.xlu0 %v743, 64
        %v1390 = vpop.permute.xlu0 %1389
        %1391 = vrot.lane.b32.xlu0 %v748, 64
        %v1392 = vpop.permute.xlu0 %1391
        %1393 = vrot.lane.b32.xlu0 %v751, 64
        %v1394 = vpop.permute.xlu0 %1393
        %1395 = vrot.lane.b32.xlu0 %v756, 64
        %v1396 = vpop.permute.xlu0 %1395
        %1397 = vrot.lane.b32.xlu0 %v759, 64
        %v1398 = vpop.permute.xlu0 %1397
        %1399 = vrot.lane.b32.xlu0 %v764, 64
        %v1400 = vpop.permute.xlu0 %1399
        %1401 = vrot.lane.b32.xlu0 %v767, 64
        %v1402 = vpop.permute.xlu0 %1401
        %vm1419 = vcmask 785920
        %1420 = vst.msk [vmem:[%s369] sm:$0xff] %vm1419, %v1372
        %1421 = vst.msk [vmem:[%s369 + $0x8] sm:$0xff] %vm1419, %v1374
        %1422 = vst.msk [vmem:[%s369 + $0x10] sm:$0xff] %vm1419, %v1376
        %1423 = vst.msk [vmem:[%s369 + $0x18] sm:$0xff] %vm1419, %v1378
        %1424 = vst.msk [vmem:[%s369 + $0x20] sm:$0xff] %vm1419, %v1380
        %1425 = vst.msk [vmem:[%s369 + $0x28] sm:$0xff] %vm1419, %v1382
        %1426 = vst.msk [vmem:[%s369 + $0x30] sm:$0xff] %vm1419, %v1384
        %1427 = vst.msk [vmem:[%s369 + $0x38] sm:$0xff] %vm1419, %v1386
        %1428 = vst.msk [vmem:[%s369 + $0x40] sm:$0xff] %vm1419, %v1388
        %1429 = vst.msk [vmem:[%s369 + $0x48] sm:$0xff] %vm1419, %v1390
        %1430 = vst.msk [vmem:[%s369 + $0x50] sm:$0xff] %vm1419, %v1392
        %1431 = vst.msk [vmem:[%s369 + $0x58] sm:$0xff] %vm1419, %v1394
        %1432 = vst.msk [vmem:[%s369 + $0x60] sm:$0xff] %vm1419, %v1396
        %1433 = vst.msk [vmem:[%s369 + $0x68] sm:$0xff] %vm1419, %v1398
        %1434 = vst.msk [vmem:[%s369 + $0x70] sm:$0xff] %vm1419, %v1400
        %1435 = vst.msk [vmem:[%s369 + $0x78] sm:$0xff] %vm1419, %v1402
        %1452 = vrot.lane.b32.xlu0 %v914, 96
        %v1453 = vpop.permute.xlu0 %1452
        %1454 = vrot.lane.b32.xlu0 %v915, 96
        %v1455 = vpop.permute.xlu0 %1454
        %1456 = vrot.lane.b32.xlu0 %v916, 96
        %v1457 = vpop.permute.xlu0 %1456
        %1458 = vrot.lane.b32.xlu0 %v917, 96
        %v1459 = vpop.permute.xlu0 %1458
        %1460 = vrot.lane.b32.xlu0 %v918, 96
        %v1461 = vpop.permute.xlu0 %1460
        %1462 = vrot.lane.b32.xlu0 %v919, 96
        %v1463 = vpop.permute.xlu0 %1462
        %1464 = vrot.lane.b32.xlu0 %v920, 96
        %v1465 = vpop.permute.xlu0 %1464
        %1466 = vrot.lane.b32.xlu0 %v921, 96
        %v1467 = vpop.permute.xlu0 %1466
        %1468 = vrot.lane.b32.xlu0 %v922, 96
        %v1469 = vpop.permute.xlu0 %1468
        %1470 = vrot.lane.b32.xlu0 %v923, 96
        %v1471 = vpop.permute.xlu0 %1470
        %1472 = vrot.lane.b32.xlu0 %v924, 96
        %v1473 = vpop.permute.xlu0 %1472
        %1474 = vrot.lane.b32.xlu0 %v925, 96
        %v1475 = vpop.permute.xlu0 %1474
        %1476 = vrot.lane.b32.xlu0 %v926, 96
        %v1477 = vpop.permute.xlu0 %1476
        %1478 = vrot.lane.b32.xlu0 %v927, 96
        %v1479 = vpop.permute.xlu0 %1478
        %1480 = vrot.lane.b32.xlu0 %v928, 96
        %v1481 = vpop.permute.xlu0 %1480
        %1482 = vrot.lane.b32.xlu0 %v929, 96
        %v1483 = vpop.permute.xlu0 %1482
        %vm1500 = vcmask 917248
        %1501 = vst.msk [vmem:[%s369] sm:$0xff] %vm1500, %v1453
        %1502 = vst.msk [vmem:[%s369 + $0x8] sm:$0xff] %vm1500, %v1455
        %1503 = vst.msk [vmem:[%s369 + $0x10] sm:$0xff] %vm1500, %v1457
        %1504 = vst.msk [vmem:[%s369 + $0x18] sm:$0xff] %vm1500, %v1459
        %1505 = vst.msk [vmem:[%s369 + $0x20] sm:$0xff] %vm1500, %v1461
        %1506 = vst.msk [vmem:[%s369 + $0x28] sm:$0xff] %vm1500, %v1463
        %1507 = vst.msk [vmem:[%s369 + $0x30] sm:$0xff] %vm1500, %v1465
        %1508 = vst.msk [vmem:[%s369 + $0x38] sm:$0xff] %vm1500, %v1467
        %1509 = vst.msk [vmem:[%s369 + $0x40] sm:$0xff] %vm1500, %v1469
        %1510 = vst.msk [vmem:[%s369 + $0x48] sm:$0xff] %vm1500, %v1471
        %1511 = vst.msk [vmem:[%s369 + $0x50] sm:$0xff] %vm1500, %v1473
        %1512 = vst.msk [vmem:[%s369 + $0x58] sm:$0xff] %vm1500, %v1475
        %1513 = vst.msk [vmem:[%s369 + $0x60] sm:$0xff] %vm1500, %v1477
        %1514 = vst.msk [vmem:[%s369 + $0x68] sm:$0xff] %vm1500, %v1479
        %1515 = vst.msk [vmem:[%s369 + $0x70] sm:$0xff] %vm1500, %v1481
        %1516 = vst.msk [vmem:[%s369 + $0x78] sm:$0xff] %vm1500, %v1483
        %vm1517 = vcmask 1048448
        %1518 = vst.msk [vmem:[%s369] sm:$0xff] %vm1517, 0.0
        %1519 = vst.msk [vmem:[%s369 + $0x8] sm:$0xff] %vm1517, 0.0
        %1520 = vst.msk [vmem:[%s369 + $0x10] sm:$0xff] %vm1517, 0.0
        %1521 = vst.msk [vmem:[%s369 + $0x18] sm:$0xff] %vm1517, 0.0
        %1522 = vst.msk [vmem:[%s369 + $0x20] sm:$0xff] %vm1517, 0.0
        %1523 = vst.msk [vmem:[%s369 + $0x28] sm:$0xff] %vm1517, 0.0
        %1524 = vst.msk [vmem:[%s369 + $0x30] sm:$0xff] %vm1517, 0.0
        %1525 = vst.msk [vmem:[%s369 + $0x38] sm:$0xff] %vm1517, 0.0
        %1526 = vst.msk [vmem:[%s369 + $0x40] sm:$0xff] %vm1517, 0.0
        %1527 = vst.msk [vmem:[%s369 + $0x48] sm:$0xff] %vm1517, 0.0
        %1528 = vst.msk [vmem:[%s369 + $0x50] sm:$0xff] %vm1517, 0.0
        %1529 = vst.msk [vmem:[%s369 + $0x58] sm:$0xff] %vm1517, 0.0
        %1530 = vst.msk [vmem:[%s369 + $0x60] sm:$0xff] %vm1517, 0.0
        %1531 = vst.msk [vmem:[%s369 + $0x68] sm:$0xff] %vm1517, 0.0
        %1532 = vst.msk [vmem:[%s369 + $0x70] sm:$0xff] %vm1517, 0.0
        %1533 = vst.msk [vmem:[%s369 + $0x78] sm:$0xff] %vm1517, 0.0
        %s1534 = sand.u32 %s252, 1
        %s1535 = scalar_lea.sflag [#allocation3], %s1534
        %s1536 = sand.u32 %s252, 1
        %s1537 = smul.addr %s1536, 128
        %s1538 = scalar_lea.vmem [#allocation2], %s1537
        // Predicated region
        $region61: #{tpu_custom_call.1} parent=59 // pred_check
          %p1539 = pneg %p262
        $region62: #{tpu_custom_call.1} parent=59 // pred_check_branch
          %1541 = sbr.rel (%p1539) target = $region64
        $region63: #{tpu_custom_call.1} parent=59 // pred_region
          %s1542 = smul.u32 16, %s24
          %s1544 = ssub.s32 2048, 2048
          %1545 = vsyncadd %s1535, %s1544
          %s1546 = smul.addr %s1542, 128
          %s1547 = scalar_lea.hbm %s10, %s1546
          %s1548 = sshll.u32 %s1538, 4
          %s1549 = int_to_ptr.vmem [resolvable:$true] %s1548
          %1554 = dma.vmem_to_hbm [thread:$0]  %s1549, 2048, %s1547, %s1535, 128, 128, 8
        $region64: #{tpu_custom_call.1} parent=59 // pred_fallthru
          _
      $region60: #{tpu_custom_call.1} parent=5 // pred_fallthru
        _
      %p1555 = scmp.le.s32.totalorder 2, %s19
      // Predicated region
      $region65: #{tpu_custom_call.1} parent=5 // pred_check
        %p1556 = pneg %p1555
      $region66: #{tpu_custom_call.1} parent=5 // pred_check_branch
        %1558 = sbr.rel (%p1556) target = $region68
      $region67: #{tpu_custom_call.1} parent=5 // pred_region
        %s1559 = ssub.s32 %s19, 2
        // Predicated region
        $region69: #{tpu_custom_call.1} parent=67 // pred_check
          %p1560 = pneg %p268
        $region70: #{tpu_custom_call.1} parent=67 // pred_check_branch
          %1562 = sbr.rel (%p1560) target = $region72
        $region71: #{tpu_custom_call.1} parent=67 // pred_region
          %s1563 = sand.u32 %s253, 1
          %s1564 = scalar_lea.sflag [#allocation3], %s1563
          %s1565 = sand.u32 %s253, 1
          %s1566 = smul.addr %s1565, 128
          %s1567 = scalar_lea.vmem [#allocation2], %s1566
          %1568 = dma.done %s1564, 2048
        $region72: #{tpu_custom_call.1} parent=67 // pred_fallthru
          _
      $region68: #{tpu_custom_call.1} parent=5 // pred_fallthru
        _
    $region6: #{tpu_custom_call.1} parent=1 // loop_footer
      %s23 = sadd.s32 1, %s19
    $region7: #{tpu_custom_call.1} parent=1 // loop_footer_branch
      %18 = sbr.rel target = $region3
    $region8: #{tpu_custom_call.1} parent=1 // loop_exit
      _
    %1569 = vsyncpa [#allocation3], 1
    %s1570 = scalar_lea.sflag [#allocation3], 1
    %1571 = vsyncpa %s1570, 1

</llo_original>
